<compile_context>
chip_gen: v6e
topology: v6e:2x2x1
jax: 0.10.0
libtpu: 0.0.40
codegen_flags: <defaults>
</compile_context>

<pallas_src>
import math

import jax
import jax.numpy as jnp
from jax.experimental import pallas as pl
from jax.experimental.pallas import tpu as pltpu


# ----------------------------- Pallas kernel --------------------------------
def multivae_kernel(x_ref,
                    wq1_ref, bq1_ref, wq2_ref, bq2_ref,
                    wp1_ref, bp1_ref, wp2_ref, bp2_ref,
                    recon_ref, enc_ref):
    latent = wq2_ref.shape[1] // 2

    # --- encoder ---
    x = x_ref[...]
    # F.normalize(x, p=2, dim=1): x / max(||x||_2, 1e-12)
    # implemented as x * rsqrt(max(sum(x^2), 1e-24))  (EUP rsqrt + VPU mul)
    sumsq = jnp.sum(x * x, axis=1, keepdims=True)
    h = x * jax.lax.rsqrt(jnp.maximum(sumsq, 1e-24))
    # dropout (eval mode) -> identity

    # q_layer 0 + tanh
    h = jnp.tanh(
        jnp.dot(h, wq1_ref[...], preferred_element_type=jnp.float32)
        + bq1_ref[...])
    # q_layer 1 (last, no tanh) -> combined [mu | logvar], single lane-dense store
    enc = (jnp.dot(h, wq2_ref[...], preferred_element_type=jnp.float32)
           + bq2_ref[...])
    enc_ref[...] = enc

    # --- reparameterize (eval mode) ---
    # TODO(synk): training-mode path (eps * exp(0.5*logvar) + mu) would use
    # pltpu.prng_seed / pltpu.stateful_normal; eval mode returns mu.
    z = enc[:, :latent]

    # --- decoder ---
    d = jnp.tanh(
        jnp.dot(z, wp1_ref[...], preferred_element_type=jnp.float32)
        + bp1_ref[...])
    recon_ref[...] = (
        jnp.dot(d, wp2_ref[...], preferred_element_type=jnp.float32)
        + bp2_ref[...])


# ------------------------------- wrapper -------------------------------------
def multivae_forward(x, params, *, block_b=256):
    """x: (B, n_items) float32. params: dict of pre-transposed weights/biases.

    Returns (recon_x, mu, logvar).
    """
    B, n_items = x.shape
    hidden = params["wq1"].shape[1]
    two_latent = params["wq2"].shape[1]
    latent = two_latent // 2

    # Batch tile: MXU-aligned when possible; fall back to the full (small) batch.
    TB = min(block_b, B)
    grid = (pl.cdiv(B, TB),)   # NOTE: main() uses B divisible by TB.

    def resident(arr):
        # Same full-extent block at every grid step -> stays VMEM resident.
        return pl.BlockSpec(arr.shape, lambda i, _s=arr.shape: tuple(0 for _ in _s))

    in_specs = [
        pl.BlockSpec((TB, n_items), lambda i: (i, 0)),          # x: batch-tiled
        resident(params["wq1"]), resident(params["bq1"]),
        resident(params["wq2"]), resident(params["bq2"]),
        resident(params["wp1"]), resident(params["bp1"]),
        resident(params["wp2"]), resident(params["bp2"]),
    ]
    out_shapes = (
        jax.ShapeDtypeStruct((B, n_items), jnp.float32),        # recon_x
        jax.ShapeDtypeStruct((B, two_latent), jnp.float32),     # [mu | logvar]
    )
    out_specs = (
        pl.BlockSpec((TB, n_items), lambda i: (i, 0)),
        pl.BlockSpec((TB, two_latent), lambda i: (i, 0)),
    )

    flops = 2 * B * (n_items * hidden + hidden * two_latent
                     + latent * hidden + hidden * n_items)
    bytes_accessed = 4 * (x.size + B * n_items + B * two_latent
                          + sum(int(p.size) for p in params.values()))
    cost = pl.CostEstimate(flops=flops,
                           transcendentals=B * (2 * hidden + 1),
                           bytes_accessed=bytes_accessed)

    recon, enc = pl.pallas_call(
        multivae_kernel,
        out_shape=out_shapes,
        grid=grid,
        in_specs=in_specs,
        out_specs=out_specs,
        compiler_params=pltpu.CompilerParams(
            dimension_semantics=("parallel",),
            vmem_limit_bytes=48 * 1024 * 1024),
        cost_estimate=cost,
    )(x,
      params["wq1"], params["bq1"], params["wq2"], params["bq2"],
      params["wp1"], params["bp1"], params["wp2"], params["bp2"])

    mu = enc[:, :latent]       # free slice in XLA
    logvar = enc[:, latent:]
    return recon, mu, logvar


# --------------------------- parameter init ----------------------------------
def xavier_normal(key, out_dim, in_dim):
    std = math.sqrt(2.0 / (in_dim + out_dim))
    # PyTorch stores Linear weight as (out, in); we transpose to (in, out).
    w = std * jax.random.normal(key, (out_dim, in_dim), dtype=jnp.float32)
    return w.T


def init_params(key, n_items, hidden_dims):
    """q_dims = [n_items] + hidden_dims ; p_dims = reversed(q_dims)."""
    q_dims = [n_items] + hidden_dims
    p_dims = q_dims[::-1]
    temp_q_dims = q_dims[:-1] + [q_dims[-1] * 2]

    keys = jax.random.split(key, 8)
    params = {}
    # q layers
    (d0, d1, d2) = temp_q_dims  # e.g. 256 -> 64 -> 64 (=2*latent)
    params["wq1"] = xavier_normal(keys[0], d1, d0)
    params["bq1"] = (0.001 * jax.random.normal(keys[1], (d1,))).reshape(1, d1)
    params["wq2"] = xavier_normal(keys[2], d2, d1)
    params["bq2"] = (0.001 * jax.random.normal(keys[3], (d2,))).reshape(1, d2)
    # p layers
    (e0, e1, e2) = p_dims       # e.g. 32 -> 64 -> 256
    params["wp1"] = xavier_normal(keys[4], e1, e0)
    params["bp1"] = (0.001 * jax.random.normal(keys[5], (e1,))).reshape(1, e1)
    params["wp2"] = xavier_normal(keys[6], e2, e1)
    params["bp2"] = (0.001 * jax.random.normal(keys[7], (e2,))).reshape(1, e2)
    return params


# ------------------------------ reference ------------------------------------
def multivae_ref(x, params):
    sumsq = jnp.sum(x * x, axis=1, keepdims=True)
    h = x * jax.lax.rsqrt(jnp.maximum(sumsq, 1e-24))   # == F.normalize eps=1e-12
    h = jnp.tanh(h @ params["wq1"] + params["bq1"])
    h = h @ params["wq2"] + params["bq2"]
    latent = params["wq2"].shape[1] // 2
    mu, logvar = h[:, :latent], h[:, latent:]
    z = mu
    d = jnp.tanh(z @ params["wp1"] + params["bp1"])
    recon = d @ params["wp2"] + params["bp2"]
    return recon, mu, logvar


# -------------------------------- main ----------------------------------------
if __name__ == "__main__":
    key = jax.random.PRNGKey(0)
    k_x, k_p = jax.random.split(key)

    batch = 512              # divisible by TB=256 -> grid=(2,), pipelined
    n_items = 256
    hidden_dims = [64, 32]   # args.hidden_dim -> latent dim = 32

    # Implicit feedback input (non-negative counts), like a user-item matrix row.
    x = jax.random.uniform(k_x, (batch, n_items), dtype=jnp.float32)

    params = init_params(k_p, n_items, hidden_dims)

    recon, mu, logvar = multivae_forward(x, params, block_b=256)
    jax.block_until_ready((recon, mu, logvar))

    # correctness check against pure-JAX reference
    r_ref, m_ref, lv_ref = multivae_ref(x, params)
    assert jnp.allclose(recon, r_ref, atol=1e-5, rtol=1e-5)
    assert jnp.allclose(mu, m_ref, atol=1e-5, rtol=1e-5)
    assert jnp.allclose(logvar, lv_ref, atol=1e-5, rtol=1e-5)

    print("KERNEL_OK")
</pallas_src>

<mosaic_0001>
module attributes {stable_mosaic.version = 11 : i64} {
  func.func @multivae_kernel(%arg0: i32, %arg1: memref<256x256xf32, #tpu.memory_space<vmem>>, %arg2: memref<256x64xf32, #tpu.memory_space<vmem>>, %arg3: memref<1x64xf32, #tpu.memory_space<vmem>>, %arg4: memref<64x64xf32, #tpu.memory_space<vmem>>, %arg5: memref<1x64xf32, #tpu.memory_space<vmem>>, %arg6: memref<32x64xf32, #tpu.memory_space<vmem>>, %arg7: memref<1x64xf32, #tpu.memory_space<vmem>>, %arg8: memref<64x256xf32, #tpu.memory_space<vmem>>, %arg9: memref<1x256xf32, #tpu.memory_space<vmem>>, %arg10: memref<256x256xf32, #tpu.memory_space<vmem>>, %arg11: memref<256x64xf32, #tpu.memory_space<vmem>>) attributes {dimension_semantics = [#tpu.dimension_semantics<parallel>], iteration_bounds = array<i64: 2>, scalar_prefetch = 0 : i64, scratch_operands = 0 : i64, tpu.core_type = #tpu.core_type<tc>, window_params = [{transform_indices = @transform_0, window_bounds = array<i64: 256, 256>}, {pipeline_mode = #tpu.pipeline_mode<synchronous>, transform_indices = @transform_1, window_bounds = array<i64: 256, 64>}, {pipeline_mode = #tpu.pipeline_mode<synchronous>, transform_indices = @transform_2, window_bounds = array<i64: 1, 64>}, {pipeline_mode = #tpu.pipeline_mode<synchronous>, transform_indices = @transform_3, window_bounds = array<i64: 64, 64>}, {pipeline_mode = #tpu.pipeline_mode<synchronous>, transform_indices = @transform_4, window_bounds = array<i64: 1, 64>}, {pipeline_mode = #tpu.pipeline_mode<synchronous>, transform_indices = @transform_5, window_bounds = array<i64: 32, 64>}, {pipeline_mode = #tpu.pipeline_mode<synchronous>, transform_indices = @transform_6, window_bounds = array<i64: 1, 64>}, {pipeline_mode = #tpu.pipeline_mode<synchronous>, transform_indices = @transform_7, window_bounds = array<i64: 64, 256>}, {pipeline_mode = #tpu.pipeline_mode<synchronous>, transform_indices = @transform_8, window_bounds = array<i64: 1, 256>}, {transform_indices = @transform_9, window_bounds = array<i64: 256, 256>}, {transform_indices = @transform_10, window_bounds = array<i64: 256, 64>}]} {
    %c0 = arith.constant 0 : index
    %c0_0 = arith.constant 0 : index
    %0 = vector.load %arg1[%c0, %c0_0] : memref<256x256xf32, #tpu.memory_space<vmem>>, vector<256x256xf32>
    %1 = arith.mulf %0, %0 : vector<256x256xf32>
    %cst = arith.constant dense<0.000000e+00> : vector<256xf32>
    %2 = vector.multi_reduction <add>, %1, %cst [1] : vector<256x256xf32> to vector<256xf32>
    %3 = vector.shape_cast %2 : vector<256xf32> to vector<256x1xf32>
    %cst_1 = arith.constant 1.000000e-24 : f32
    %4 = vector.broadcast %cst_1 : f32 to vector<256x1xf32>
    %5 = arith.maximumf %3, %4 : vector<256x1xf32>
    %6 = math.rsqrt %5 : vector<256x1xf32>
    %7 = vector.broadcast %6 : vector<256x1xf32> to vector<256x256xf32>
    %8 = arith.mulf %0, %7 : vector<256x256xf32>
    %c0_2 = arith.constant 0 : index
    %c0_3 = arith.constant 0 : index
    %9 = vector.load %arg2[%c0_2, %c0_3] : memref<256x64xf32, #tpu.memory_space<vmem>>, vector<256x64xf32>
    %cst_4 = arith.constant dense<0.000000e+00> : vector<256x64xf32>
    %10 = tpu.matmul %8, %9, %cst_4 {dimension_numbers = #tpu.dot_dimension_numbers<[1], [0], [0], [1], [0, 0, 1, 1], [], []>} : vector<256x256xf32>, vector<256x64xf32>, vector<256x64xf32> -> vector<256x64xf32>
    %c0_5 = arith.constant 0 : index
    %c0_6 = arith.constant 0 : index
    %11 = vector.load %arg3[%c0_5, %c0_6] : memref<1x64xf32, #tpu.memory_space<vmem>>, vector<1x64xf32>
    %12 = vector.broadcast %11 : vector<1x64xf32> to vector<256x64xf32>
    %13 = arith.addf %10, %12 : vector<256x64xf32>
    %14 = math.tanh %13 : vector<256x64xf32>
    %c0_7 = arith.constant 0 : index
    %c0_8 = arith.constant 0 : index
    %15 = vector.load %arg4[%c0_7, %c0_8] : memref<64x64xf32, #tpu.memory_space<vmem>>, vector<64x64xf32>
    %cst_9 = arith.constant dense<0.000000e+00> : vector<256x64xf32>
    %16 = tpu.matmul %14, %15, %cst_9 {dimension_numbers = #tpu.dot_dimension_numbers<[1], [0], [0], [1], [0, 0, 1, 1], [], []>} : vector<256x64xf32>, vector<64x64xf32>, vector<256x64xf32> -> vector<256x64xf32>
    %c0_10 = arith.constant 0 : index
    %c0_11 = arith.constant 0 : index
    %17 = vector.load %arg5[%c0_10, %c0_11] : memref<1x64xf32, #tpu.memory_space<vmem>>, vector<1x64xf32>
    %18 = vector.broadcast %17 : vector<1x64xf32> to vector<256x64xf32>
    %19 = arith.addf %16, %18 : vector<256x64xf32>
    %c0_12 = arith.constant 0 : index
    %c0_13 = arith.constant 0 : index
    %20 = vector.load %arg11[%c0_12, %c0_13] : memref<256x64xf32, #tpu.memory_space<vmem>>, vector<256x64xf32>
    tpu.vector_store %arg11[%c0_12, %c0_13], %19 {strides = array<i32>} : memref<256x64xf32, #tpu.memory_space<vmem>>, vector<256x64xf32>,
    %21 = vector.extract_strided_slice %19 {offsets = [0, 0], sizes = [256, 32], strides = [1, 1]} : vector<256x64xf32> to vector<256x32xf32>
    %c0_14 = arith.constant 0 : index
    %c0_15 = arith.constant 0 : index
    %22 = vector.load %arg6[%c0_14, %c0_15] : memref<32x64xf32, #tpu.memory_space<vmem>>, vector<32x64xf32>
    %cst_16 = arith.constant dense<0.000000e+00> : vector<256x64xf32>
    %23 = tpu.matmul %21, %22, %cst_16 {dimension_numbers = #tpu.dot_dimension_numbers<[1], [0], [0], [1], [0, 0, 1, 1], [], []>} : vector<256x32xf32>, vector<32x64xf32>, vector<256x64xf32> -> vector<256x64xf32>
    %c0_17 = arith.constant 0 : index
    %c0_18 = arith.constant 0 : index
    %24 = vector.load %arg7[%c0_17, %c0_18] : memref<1x64xf32, #tpu.memory_space<vmem>>, vector<1x64xf32>
    %25 = vector.broadcast %24 : vector<1x64xf32> to vector<256x64xf32>
    %26 = arith.addf %23, %25 : vector<256x64xf32>
    %27 = math.tanh %26 : vector<256x64xf32>
    %c0_19 = arith.constant 0 : index
    %c0_20 = arith.constant 0 : index
    %28 = vector.load %arg8[%c0_19, %c0_20] : memref<64x256xf32, #tpu.memory_space<vmem>>, vector<64x256xf32>
    %cst_21 = arith.constant dense<0.000000e+00> : vector<256x256xf32>
    %29 = tpu.matmul %27, %28, %cst_21 {dimension_numbers = #tpu.dot_dimension_numbers<[1], [0], [0], [1], [0, 0, 1, 1], [], []>} : vector<256x64xf32>, vector<64x256xf32>, vector<256x256xf32> -> vector<256x256xf32>
    %c0_22 = arith.constant 0 : index
    %c0_23 = arith.constant 0 : index
    %30 = vector.load %arg9[%c0_22, %c0_23] : memref<1x256xf32, #tpu.memory_space<vmem>>, vector<1x256xf32>
    %31 = vector.broadcast %30 : vector<1x256xf32> to vector<256x256xf32>
    %32 = arith.addf %29, %31 : vector<256x256xf32>
    %c0_24 = arith.constant 0 : index
    %c0_25 = arith.constant 0 : index
    %33 = vector.load %arg10[%c0_24, %c0_25] : memref<256x256xf32, #tpu.memory_space<vmem>>, vector<256x256xf32>
    tpu.vector_store %arg10[%c0_24, %c0_25], %32 {strides = array<i32>} : memref<256x256xf32, #tpu.memory_space<vmem>>, vector<256x256xf32>,
    return
  }
  func.func @transform_0(%arg0: i32) -> (i32, i32) {
    %c0_i32 = arith.constant 0 : i32
    %c0_i32_0 = arith.constant 0 : i32
    return %arg0, %c0_i32 : i32, i32
  }
  func.func @transform_1(%arg0: i32) -> (i32, i32) {
    %c0_i32 = arith.constant 0 : i32
    %c0_i32_0 = arith.constant 0 : i32
    %c0_i32_1 = arith.constant 0 : i32
    return %c0_i32, %c0_i32_0 : i32, i32
  }
  func.func @transform_2(%arg0: i32) -> (i32, i32) {
    %c0_i32 = arith.constant 0 : i32
    %c0_i32_0 = arith.constant 0 : i32
    %c0_i32_1 = arith.constant 0 : i32
    return %c0_i32, %c0_i32_0 : i32, i32
  }
  func.func @transform_3(%arg0: i32) -> (i32, i32) {
    %c0_i32 = arith.constant 0 : i32
    %c0_i32_0 = arith.constant 0 : i32
    %c0_i32_1 = arith.constant 0 : i32
    return %c0_i32, %c0_i32_0 : i32, i32
  }
  func.func @transform_4(%arg0: i32) -> (i32, i32) {
    %c0_i32 = arith.constant 0 : i32
    %c0_i32_0 = arith.constant 0 : i32
    %c0_i32_1 = arith.constant 0 : i32
    return %c0_i32, %c0_i32_0 : i32, i32
  }
  func.func @transform_5(%arg0: i32) -> (i32, i32) {
    %c0_i32 = arith.constant 0 : i32
    %c0_i32_0 = arith.constant 0 : i32
    %c0_i32_1 = arith.constant 0 : i32
    return %c0_i32, %c0_i32_0 : i32, i32
  }
  func.func @transform_6(%arg0: i32) -> (i32, i32) {
    %c0_i32 = arith.constant 0 : i32
    %c0_i32_0 = arith.constant 0 : i32
    %c0_i32_1 = arith.constant 0 : i32
    return %c0_i32, %c0_i32_0 : i32, i32
  }
  func.func @transform_7(%arg0: i32) -> (i32, i32) {
    %c0_i32 = arith.constant 0 : i32
    %c0_i32_0 = arith.constant 0 : i32
    %c0_i32_1 = arith.constant 0 : i32
    return %c0_i32, %c0_i32_0 : i32, i32
  }
  func.func @transform_8(%arg0: i32) -> (i32, i32) {
    %c0_i32 = arith.constant 0 : i32
    %c0_i32_0 = arith.constant 0 : i32
    %c0_i32_1 = arith.constant 0 : i32
    return %c0_i32, %c0_i32_0 : i32, i32
  }
  func.func @transform_9(%arg0: i32) -> (i32, i32) {
    %c0_i32 = arith.constant 0 : i32
    %c0_i32_0 = arith.constant 0 : i32
    return %arg0, %c0_i32 : i32, i32
  }
  func.func @transform_10(%arg0: i32) -> (i32, i32) {
    %c0_i32 = arith.constant 0 : i32
    %c0_i32_0 = arith.constant 0 : i32
    return %arg0, %c0_i32 : i32, i32
  }
}

</mosaic_0001>

<llo_original>
// kernel: tpu_custom_call.1
$region0: #{tpu_custom_call.1}
  #allocation0 [shape = 'u32[]', space=smem, size = 0x4, offset = 0x4, fixed_abs, tag = 'smem constant byte address 0x4 - core index']
  #allocation1 [shape = 'u32[144,128]{1,0:T(1,128)}', space=vmem, size = 0x12000, scoped, tag = 'internal scratch']
  %s0 = inlined_call_operand.hbm [shape: f32[512,256], index: 0, kind: input, shape index: {}]
  %s1 = inlined_call_operand.vmem [shape: f32[256,64], index: 1, kind: input, shape index: {}]
  %s2 = inlined_call_operand.vmem [shape: f32[1,64], index: 2, kind: input, shape index: {}]
  %s3 = inlined_call_operand.vmem [shape: f32[64,64], index: 3, kind: input, shape index: {}]
  %s4 = inlined_call_operand.vmem [shape: f32[1,64], index: 4, kind: input, shape index: {}]
  %s5 = inlined_call_operand.vmem [shape: f32[32,64], index: 5, kind: input, shape index: {}]
  %s6 = inlined_call_operand.vmem [shape: f32[1,64], index: 6, kind: input, shape index: {}]
  %s7 = inlined_call_operand.vmem [shape: f32[64,256], index: 7, kind: input, shape index: {}]
  %s8 = inlined_call_operand.vmem [shape: f32[1,256], index: 8, kind: input, shape index: {}]
  %s9 = inlined_call_operand.hbm [shape: f32[512,256], index: 9, kind: output, shape index: {0}]
  %s10 = inlined_call_operand.vmem [shape: f32[512,64], index: 10, kind: output, shape index: {1}]
  %11 = xla_tuple %s9, %s10
  %s12 = sld [smem:[#allocation0]]
  $region81: #{tpu_custom_call.1} parent=0
    _
  %s14 = ssub.s32 1, %s12
  %s15 = scalar_select 0, %s14, %s12
  $region1: #{tpu_custom_call.1} parent=0
    #allocation2 [shape = 'u8[524288]{0}', space=vmem, size = 0x80000, scoped, tag = 'input window, operand 0']
    #allocation3 [shape = 's32[2]{0}', space=sflag, size = 0x8, scoped, tag = 'scoped memory for tpu_custom_call.1']
    #allocation4 [shape = 's32[2]{0}', space=sflag, size = 0x8, scoped, tag = 'scoped memory for tpu_custom_call.1']
    #allocation5 [shape = 'u8[524288]{0}', space=vmem, size = 0x80000, scoped, tag = 'output window, operand 0']
    %16 = vsyncpa [#allocation3], 0
    %s17 = scalar_lea.sflag [#allocation3], 1
    %18 = vsyncpa %s17, 0
    %19 = vsyncpa [#allocation4], 0
    %s20 = scalar_lea.sflag [#allocation4], 1
    %21 = vsyncpa %s20, 0
    loop: start=0, step=1, limit=4
    $region2: #{tpu_custom_call.1} parent=1 // loop_pre_header
      _
    $region3: #{tpu_custom_call.1} parent=1 // loop_header
      %s23 = sphi 0, %s27
      %p24 = scmp.ge.s32.totalorder %s23, 4
      %s33 = sphi 0, %s35
      %s36 = sphi 0, %s33
      %s37 = sphi 0, %s36
      %s53 = sphi 0, %s37
      %s57 = sphi 0, %s57
      %s59 = sphi 0, %s57
      %s60 = sphi 0, %s59
      %s74 = sphi 0, %s60
      %s78 = sphi 0, %s78
      %s80 = sphi 0, %s78
      %s81 = sphi 0, %s80
      %s95 = sphi 0, %s81
      %s99 = sphi 0, %s99
      %s101 = sphi 0, %s99
      %s102 = sphi 0, %s101
      %s116 = sphi 0, %s102
      %s120 = sphi 0, %s120
      %s122 = sphi 0, %s120
      %s123 = sphi 0, %s122
      %s137 = sphi 0, %s123
      %s141 = sphi 0, %s141
      %s143 = sphi 0, %s141
      %s144 = sphi 0, %s143
      %s158 = sphi 0, %s144
      %s162 = sphi 0, %s162
      %s164 = sphi 0, %s162
      %s165 = sphi 0, %s164
      %s179 = sphi 0, %s165
      %s183 = sphi 0, %s183
      %s185 = sphi 0, %s183
      %s186 = sphi 0, %s185
      %s200 = sphi 0, %s186
      %s204 = sphi 0, %s204
      %s206 = sphi 0, %s204
      %s207 = sphi 0, %s206
      %s221 = sphi 0, %s207
      %s227 = sphi 0, %s229
      %s230 = sphi 0, %s227
      %s231 = sphi 0, %s230
      %s247 = sphi 0, %s231
      %s253 = sphi 0, %s255
      %s256 = sphi 0, %s253
      %s257 = sphi 0, %s256
      %s273 = sphi 0, %s257
    $region4: #{tpu_custom_call.1} parent=1 // loop_header_branch
      %26 = sbr.rel (%p24) target = $region8
    $region5: #{tpu_custom_call.1} parent=1 // loop_body
      %s28 = ssub.s32 %s23, 1
      %s29 = ssub.s32 %s23, 2
      %s30 = sadd.s32 %s23, 1
      %s31 = ssub.s32 %s23, %s30
      %p32 = scmp.eq.s32.totalorder %s31, 0
      %s34 = sadd.s32 %s33, 1
      %s35 = scalar_select %p32, %s33, %s34
      %p38 = pneg %p32
      %p39 = scmp.eq.s32.totalorder %s23, 1
      %p40 = por %p38, %p39
      %p41 = scmp.ne.s32.totalorder %s33, %s36
      %p42 = scmp.eq.s32.totalorder %s23, 0
      %p43 = por %p41, %p42
      %p44 = scmp.ne.s32.totalorder %s33, %s36
      %p45 = scmp.eq.s32.totalorder %s28, 1
      %p46 = por %p44, %p45
      %p47 = scmp.ne.s32.totalorder %s36, %s37
      %p48 = scmp.eq.s32.totalorder %s28, 0
      %p49 = por %p47, %p48
      %p50 = scmp.ne.s32.totalorder %s36, %s37
      %p51 = scmp.eq.s32.totalorder %s29, 1
      %p52 = por %p50, %p51
      %p54 = scmp.ne.s32.totalorder %s37, %s53
      %p55 = scmp.eq.s32.totalorder %s29, 0
      %p56 = por %p54, %p55
      %s58 = sadd.s32 %s57, 1
      %p61 = scmp.eq.s32.totalorder %s23, 1
      %p62 = scmp.ne.s32.totalorder %s57, %s59
      %p63 = scmp.eq.s32.totalorder %s23, 0
      %p64 = por %p62, %p63
      %p65 = scmp.ne.s32.totalorder %s57, %s59
      %p66 = scmp.eq.s32.totalorder %s28, 1
      %p67 = por %p65, %p66
      %p68 = scmp.ne.s32.totalorder %s59, %s60
      %p69 = scmp.eq.s32.totalorder %s28, 0
      %p70 = por %p68, %p69
      %p71 = scmp.ne.s32.totalorder %s59, %s60
      %p72 = scmp.eq.s32.totalorder %s29, 1
      %p73 = por %p71, %p72
      %p75 = scmp.ne.s32.totalorder %s60, %s74
      %p76 = scmp.eq.s32.totalorder %s29, 0
      %p77 = por %p75, %p76
      %s79 = sadd.s32 %s78, 1
      %p82 = scmp.eq.s32.totalorder %s23, 1
      %p83 = scmp.ne.s32.totalorder %s78, %s80
      %p84 = scmp.eq.s32.totalorder %s23, 0
      %p85 = por %p83, %p84
      %p86 = scmp.ne.s32.totalorder %s78, %s80
      %p87 = scmp.eq.s32.totalorder %s28, 1
      %p88 = por %p86, %p87
      %p89 = scmp.ne.s32.totalorder %s80, %s81
      %p90 = scmp.eq.s32.totalorder %s28, 0
      %p91 = por %p89, %p90
      %p92 = scmp.ne.s32.totalorder %s80, %s81
      %p93 = scmp.eq.s32.totalorder %s29, 1
      %p94 = por %p92, %p93
      %p96 = scmp.ne.s32.totalorder %s81, %s95
      %p97 = scmp.eq.s32.totalorder %s29, 0
      %p98 = por %p96, %p97
      %s100 = sadd.s32 %s99, 1
      %p103 = scmp.eq.s32.totalorder %s23, 1
      %p104 = scmp.ne.s32.totalorder %s99, %s101
      %p105 = scmp.eq.s32.totalorder %s23, 0
      %p106 = por %p104, %p105
      %p107 = scmp.ne.s32.totalorder %s99, %s101
      %p108 = scmp.eq.s32.totalorder %s28, 1
      %p109 = por %p107, %p108
      %p110 = scmp.ne.s32.totalorder %s101, %s102
      %p111 = scmp.eq.s32.totalorder %s28, 0
      %p112 = por %p110, %p111
      %p113 = scmp.ne.s32.totalorder %s101, %s102
      %p114 = scmp.eq.s32.totalorder %s29, 1
      %p115 = por %p113, %p114
      %p117 = scmp.ne.s32.totalorder %s102, %s116
      %p118 = scmp.eq.s32.totalorder %s29, 0
      %p119 = por %p117, %p118
      %s121 = sadd.s32 %s120, 1
      %p124 = scmp.eq.s32.totalorder %s23, 1
      %p125 = scmp.ne.s32.totalorder %s120, %s122
      %p126 = scmp.eq.s32.totalorder %s23, 0
      %p127 = por %p125, %p126
      %p128 = scmp.ne.s32.totalorder %s120, %s122
      %p129 = scmp.eq.s32.totalorder %s28, 1
      %p130 = por %p128, %p129
      %p131 = scmp.ne.s32.totalorder %s122, %s123
      %p132 = scmp.eq.s32.totalorder %s28, 0
      %p133 = por %p131, %p132
      %p134 = scmp.ne.s32.totalorder %s122, %s123
      %p135 = scmp.eq.s32.totalorder %s29, 1
      %p136 = por %p134, %p135
      %p138 = scmp.ne.s32.totalorder %s123, %s137
      %p139 = scmp.eq.s32.totalorder %s29, 0
      %p140 = por %p138, %p139
      %s142 = sadd.s32 %s141, 1
      %p145 = scmp.eq.s32.totalorder %s23, 1
      %p146 = scmp.ne.s32.totalorder %s141, %s143
      %p147 = scmp.eq.s32.totalorder %s23, 0
      %p148 = por %p146, %p147
      %p149 = scmp.ne.s32.totalorder %s141, %s143
      %p150 = scmp.eq.s32.totalorder %s28, 1
      %p151 = por %p149, %p150
      %p152 = scmp.ne.s32.totalorder %s143, %s144
      %p153 = scmp.eq.s32.totalorder %s28, 0
      %p154 = por %p152, %p153
      %p155 = scmp.ne.s32.totalorder %s143, %s144
      %p156 = scmp.eq.s32.totalorder %s29, 1
      %p157 = por %p155, %p156
      %p159 = scmp.ne.s32.totalorder %s144, %s158
      %p160 = scmp.eq.s32.totalorder %s29, 0
      %p161 = por %p159, %p160
      %s163 = sadd.s32 %s162, 1
      %p166 = scmp.eq.s32.totalorder %s23, 1
      %p167 = scmp.ne.s32.totalorder %s162, %s164
      %p168 = scmp.eq.s32.totalorder %s23, 0
      %p169 = por %p167, %p168
      %p170 = scmp.ne.s32.totalorder %s162, %s164
      %p171 = scmp.eq.s32.totalorder %s28, 1
      %p172 = por %p170, %p171
      %p173 = scmp.ne.s32.totalorder %s164, %s165
      %p174 = scmp.eq.s32.totalorder %s28, 0
      %p175 = por %p173, %p174
      %p176 = scmp.ne.s32.totalorder %s164, %s165
      %p177 = scmp.eq.s32.totalorder %s29, 1
      %p178 = por %p176, %p177
      %p180 = scmp.ne.s32.totalorder %s165, %s179
      %p181 = scmp.eq.s32.totalorder %s29, 0
      %p182 = por %p180, %p181
      %s184 = sadd.s32 %s183, 1
      %p187 = scmp.eq.s32.totalorder %s23, 1
      %p188 = scmp.ne.s32.totalorder %s183, %s185
      %p189 = scmp.eq.s32.totalorder %s23, 0
      %p190 = por %p188, %p189
      %p191 = scmp.ne.s32.totalorder %s183, %s185
      %p192 = scmp.eq.s32.totalorder %s28, 1
      %p193 = por %p191, %p192
      %p194 = scmp.ne.s32.totalorder %s185, %s186
      %p195 = scmp.eq.s32.totalorder %s28, 0
      %p196 = por %p194, %p195
      %p197 = scmp.ne.s32.totalorder %s185, %s186
      %p198 = scmp.eq.s32.totalorder %s29, 1
      %p199 = por %p197, %p198
      %p201 = scmp.ne.s32.totalorder %s186, %s200
      %p202 = scmp.eq.s32.totalorder %s29, 0
      %p203 = por %p201, %p202
      %s205 = sadd.s32 %s204, 1
      %p208 = scmp.eq.s32.totalorder %s23, 1
      %p209 = scmp.ne.s32.totalorder %s204, %s206
      %p210 = scmp.eq.s32.totalorder %s23, 0
      %p211 = por %p209, %p210
      %p212 = scmp.ne.s32.totalorder %s204, %s206
      %p213 = scmp.eq.s32.totalorder %s28, 1
      %p214 = por %p212, %p213
      %p215 = scmp.ne.s32.totalorder %s206, %s207
      %p216 = scmp.eq.s32.totalorder %s28, 0
      %p217 = por %p215, %p216
      %p218 = scmp.ne.s32.totalorder %s206, %s207
      %p219 = scmp.eq.s32.totalorder %s29, 1
      %p220 = por %p218, %p219
      %p222 = scmp.ne.s32.totalorder %s207, %s221
      %p223 = scmp.eq.s32.totalorder %s29, 0
      %p224 = por %p222, %p223
      %s225 = ssub.s32 %s23, %s30
      %p226 = scmp.eq.s32.totalorder %s225, 0
      %s228 = sadd.s32 %s227, 1
      %s229 = scalar_select %p226, %s227, %s228
      %p232 = pneg %p226
      %p233 = scmp.eq.s32.totalorder %s23, 1
      %p234 = por %p232, %p233
      %p235 = scmp.ne.s32.totalorder %s227, %s230
      %p236 = scmp.eq.s32.totalorder %s23, 0
      %p237 = por %p235, %p236
      %p238 = scmp.ne.s32.totalorder %s227, %s230
      %p239 = scmp.eq.s32.totalorder %s28, 1
      %p240 = por %p238, %p239
      %p241 = scmp.ne.s32.totalorder %s230, %s231
      %p242 = scmp.eq.s32.totalorder %s28, 0
      %p243 = por %p241, %p242
      %p244 = scmp.ne.s32.totalorder %s230, %s231
      %p245 = scmp.eq.s32.totalorder %s29, 1
      %p246 = por %p244, %p245
      %p248 = scmp.ne.s32.totalorder %s231, %s247
      %p249 = scmp.eq.s32.totalorder %s29, 0
      %p250 = por %p248, %p249
      %s251 = ssub.s32 %s23, %s30
      %p252 = scmp.eq.s32.totalorder %s251, 0
      %s254 = sadd.s32 %s253, 1
      %s255 = scalar_select %p252, %s253, %s254
      %p258 = pneg %p252
      %p259 = scmp.eq.s32.totalorder %s23, 1
      %p260 = por %p258, %p259
      %p261 = scmp.ne.s32.totalorder %s253, %s256
      %p262 = scmp.eq.s32.totalorder %s23, 0
      %p263 = por %p261, %p262
      %p264 = scmp.ne.s32.totalorder %s253, %s256
      %p265 = scmp.eq.s32.totalorder %s28, 1
      %p266 = por %p264, %p265
      %p267 = scmp.ne.s32.totalorder %s256, %s257
      %p268 = scmp.eq.s32.totalorder %s28, 0
      %p269 = por %p267, %p268
      %p270 = scmp.ne.s32.totalorder %s256, %s257
      %p271 = scmp.eq.s32.totalorder %s29, 1
      %p272 = por %p270, %p271
      %p274 = scmp.ne.s32.totalorder %s257, %s273
      %p275 = scmp.eq.s32.totalorder %s29, 0
      %p276 = por %p274, %p275
      %p277 = scmp.le.s32.totalorder 1, %s23
      %p278 = scmp.lt.s32.totalorder %s23, 3
      %p279 = pnand %p277, %p278
      %p280 = pneg %p279
      // Predicated region
      $region9: #{tpu_custom_call.1} parent=5 // pred_check
        _
      $region10: #{tpu_custom_call.1} parent=5 // pred_check_branch
        %282 = sbr.rel (%p279) target = $region12
      $region11: #{tpu_custom_call.1} parent=5 // pred_region
        %s283 = ssub.s32 %s23, 1
        // Predicated region
        $region13: #{tpu_custom_call.1} parent=11 // pred_check
          %p284 = pneg %p70
        $region14: #{tpu_custom_call.1} parent=11 // pred_check_branch
          %286 = sbr.rel (%p284) target = $region16
        $region15: #{tpu_custom_call.1} parent=11 // pred_region
          _
        $region16: #{tpu_custom_call.1} parent=11 // pred_fallthru
          _
        // Predicated region
        $region17: #{tpu_custom_call.1} parent=11 // pred_check
          %p287 = pneg %p91
        $region18: #{tpu_custom_call.1} parent=11 // pred_check_branch
          %289 = sbr.rel (%p287) target = $region20
        $region19: #{tpu_custom_call.1} parent=11 // pred_region
          _
        $region20: #{tpu_custom_call.1} parent=11 // pred_fallthru
          _
        // Predicated region
        $region21: #{tpu_custom_call.1} parent=11 // pred_check
          %p290 = pneg %p112
        $region22: #{tpu_custom_call.1} parent=11 // pred_check_branch
          %292 = sbr.rel (%p290) target = $region24
        $region23: #{tpu_custom_call.1} parent=11 // pred_region
          _
        $region24: #{tpu_custom_call.1} parent=11 // pred_fallthru
          _
        // Predicated region
        $region25: #{tpu_custom_call.1} parent=11 // pred_check
          %p293 = pneg %p133
        $region26: #{tpu_custom_call.1} parent=11 // pred_check_branch
          %295 = sbr.rel (%p293) target = $region28
        $region27: #{tpu_custom_call.1} parent=11 // pred_region
          _
        $region28: #{tpu_custom_call.1} parent=11 // pred_fallthru
          _
        // Predicated region
        $region29: #{tpu_custom_call.1} parent=11 // pred_check
          %p296 = pneg %p154
        $region30: #{tpu_custom_call.1} parent=11 // pred_check_branch
          %298 = sbr.rel (%p296) target = $region32
        $region31: #{tpu_custom_call.1} parent=11 // pred_region
          _
        $region32: #{tpu_custom_call.1} parent=11 // pred_fallthru
          _
        // Predicated region
        $region33: #{tpu_custom_call.1} parent=11 // pred_check
          %p299 = pneg %p175
        $region34: #{tpu_custom_call.1} parent=11 // pred_check_branch
          %301 = sbr.rel (%p299) target = $region36
        $region35: #{tpu_custom_call.1} parent=11 // pred_region
          _
        $region36: #{tpu_custom_call.1} parent=11 // pred_fallthru
          _
        // Predicated region
        $region37: #{tpu_custom_call.1} parent=11 // pred_check
          %p302 = pneg %p196
        $region38: #{tpu_custom_call.1} parent=11 // pred_check_branch
          %304 = sbr.rel (%p302) target = $region40
        $region39: #{tpu_custom_call.1} parent=11 // pred_region
          _
        $region40: #{tpu_custom_call.1} parent=11 // pred_fallthru
          _
        // Predicated region
        $region41: #{tpu_custom_call.1} parent=11 // pred_check
          %p305 = pneg %p217
        $region42: #{tpu_custom_call.1} parent=11 // pred_check_branch
          %307 = sbr.rel (%p305) target = $region44
        $region43: #{tpu_custom_call.1} parent=11 // pred_region
          _
        $region44: #{tpu_custom_call.1} parent=11 // pred_fallthru
          _
      $region12: #{tpu_custom_call.1} parent=5 // pred_fallthru
        _
      %p308 = scmp.lt.s32.totalorder %s23, 2
      // Predicated region
      $region45: #{tpu_custom_call.1} parent=5 // pred_check
        %p309 = pneg %p308
      $region46: #{tpu_custom_call.1} parent=5 // pred_check_branch
        %311 = sbr.rel (%p309) target = $region48
      $region47: #{tpu_custom_call.1} parent=5 // pred_region
        // Predicated region
        $region49: #{tpu_custom_call.1} parent=47 // pred_check
          %p312 = pneg %p43
        $region50: #{tpu_custom_call.1} parent=47 // pred_check_branch
          %314 = sbr.rel (%p312) target = $region52
        $region51: #{tpu_custom_call.1} parent=47 // pred_region
          %s315 = sand.u32 %s33, 1
          %s316 = scalar_lea.sflag [#allocation3], %s315
          %s317 = sand.u32 %s33, 1
          %s318 = smul.addr %s317, 512
          %s319 = scalar_lea.vmem [#allocation2], %s318
          %s320 = smul.u32 32, %s23
          %s322 = ssub.s32 8192, 8192
          %323 = vsyncadd %s316, %s322
          %s324 = smul.addr %s320, 2
          %s325 = smul.addr %s324, 128
          %s326 = scalar_lea.hbm %s0, %s325
          %s327 = sshll.u32 %s319, 4
          %s328 = int_to_ptr.vmem [resolvable:$true] %s327
          %333 = dma.hbm_to_vmem [thread:$0]  %s326, 8192, %s328, %s316, 256, 256, 16
        $region52: #{tpu_custom_call.1} parent=47 // pred_fallthru
          _
      $region48: #{tpu_custom_call.1} parent=5 // pred_fallthru
        _
      %p334 = scmp.le.s32.totalorder 1, %s23
      %p335 = scmp.lt.s32.totalorder %s23, 3
      %p336 = pnand %p334, %p335
      %p337 = pneg %p336
      // Predicated region
      $region53: #{tpu_custom_call.1} parent=5 // pred_check
        _
      $region54: #{tpu_custom_call.1} parent=5 // pred_check_branch
        %339 = sbr.rel (%p336) target = $region56
      $region55: #{tpu_custom_call.1} parent=5 // pred_region
        %s340 = ssub.s32 %s23, 1
        %s341 = sand.u32 %s36, 1
        %s342 = scalar_lea.sflag [#allocation3], %s341
        %s343 = sand.u32 %s36, 1
        %s344 = smul.addr %s343, 512
        %s345 = scalar_lea.vmem [#allocation2], %s344
        // Predicated region
        $region57: #{tpu_custom_call.1} parent=55 // pred_check
          %p346 = pneg %p49
        $region58: #{tpu_custom_call.1} parent=55 // pred_check_branch
          %348 = sbr.rel (%p346) target = $region60
        $region59: #{tpu_custom_call.1} parent=55 // pred_region
          %349 = dma.done %s342, 8192
        $region60: #{tpu_custom_call.1} parent=55 // pred_fallthru
          _
        %s350 = sand.u32 %s36, 1
        %s351 = scalar_lea.sflag [#allocation3], %s350
        %s352 = sand.u32 %s36, 1
        %s353 = smul.addr %s352, 512
        %s354 = scalar_lea.vmem [#allocation2], %s353
        %p355 = pneg %p49
        %p356 = pneg %p46
        %p357 = pneg %p70
        %p358 = pneg %p67
        %p359 = pneg %p91
        %p360 = pneg %p88
        %p361 = pneg %p112
        %p362 = pneg %p109
        %p363 = pneg %p133
        %p364 = pneg %p130
        %p365 = pneg %p154
        %p366 = pneg %p151
        %p367 = pneg %p175
        %p368 = pneg %p172
        %p369 = pneg %p196
        %p370 = pneg %p193
        %p371 = pneg %p217
        %p372 = pneg %p214
        %p373 = pneg %p243
        %p374 = pneg %p240
        %s375 = sand.u32 %s230, 1
        %s376 = scalar_lea.sflag [#allocation4], %s375
        %s377 = sand.u32 %s230, 1
        %s378 = smul.addr %s377, 512
        %s379 = scalar_lea.vmem [#allocation5], %s378
        %p380 = pneg %p269
        %p381 = pneg %p266
        %s382 = smul.u32 32, %s28
        %p383 = scmp.lt.s32.totalorder %s382, 63
        %s384 = scalar_select %p383, %s382, 63
        %s385 = smul.addr %s384, 8
        %s386 = scalar_lea.vmem %s10, %s385
        %s387 = smul.u32 32, %s28
        %s388 = smul.u32 32, %s28
        %s389 = smul.u32 32, %s28
        %p390 = scmp.lt.s32.totalorder %s389, 63
        %s391 = scalar_select %p390, %s389, 63
        %s392 = smul.addr %s391, 8
        %s393 = scalar_lea.vmem %s10, %s392
        %s394 = smul.u32 32, %s28
        %v395 = vld [vmem:[%s345] sm:$0xff]
        %v396 = vld [vmem:[%s345 + $0x8] sm:$0xff]
        %v397 = vld [vmem:[%s345 + $0x10] sm:$0xff]
        %v398 = vld [vmem:[%s345 + $0x18] sm:$0xff]
        %v399 = vld [vmem:[%s345 + $0x20] sm:$0xff]
        %v400 = vld [vmem:[%s345 + $0x28] sm:$0xff]
        %v401 = vld [vmem:[%s345 + $0x30] sm:$0xff]
        %v402 = vld [vmem:[%s345 + $0x38] sm:$0xff]
        %v403 = vld [vmem:[%s345 + $0x40] sm:$0xff]
        %v404 = vld [vmem:[%s345 + $0x48] sm:$0xff]
        %v405 = vld [vmem:[%s345 + $0x50] sm:$0xff]
        %v406 = vld [vmem:[%s345 + $0x58] sm:$0xff]
        %v407 = vld [vmem:[%s345 + $0x60] sm:$0xff]
        %v408 = vld [vmem:[%s345 + $0x68] sm:$0xff]
        %v409 = vld [vmem:[%s345 + $0x70] sm:$0xff]
        %v410 = vld [vmem:[%s345 + $0x78] sm:$0xff]
        %v411 = vld [vmem:[%s345 + $0x80] sm:$0xff]
        %v412 = vld [vmem:[%s345 + $0x88] sm:$0xff]
        %v413 = vld [vmem:[%s345 + $0x90] sm:$0xff]
        %v414 = vld [vmem:[%s345 + $0x98] sm:$0xff]
        %v415 = vld [vmem:[%s345 + $0xa0] sm:$0xff]
        %v416 = vld [vmem:[%s345 + $0xa8] sm:$0xff]
        %v417 = vld [vmem:[%s345 + $0xb0] sm:$0xff]
        %v418 = vld [vmem:[%s345 + $0xb8] sm:$0xff]
        %v419 = vld [vmem:[%s345 + $0xc0] sm:$0xff]
        %v420 = vld [vmem:[%s345 + $0xc8] sm:$0xff]
        %v421 = vld [vmem:[%s345 + $0xd0] sm:$0xff]
        %v422 = vld [vmem:[%s345 + $0xd8] sm:$0xff]
        %v423 = vld [vmem:[%s345 + $0xe0] sm:$0xff]
        %v424 = vld [vmem:[%s345 + $0xe8] sm:$0xff]
        %v425 = vld [vmem:[%s345 + $0xf0] sm:$0xff]
        %v426 = vld [vmem:[%s345 + $0xf8] sm:$0xff]
        %v427 = vld [vmem:[%s345 + $0x100] sm:$0xff]
        %v428 = vld [vmem:[%s345 + $0x108] sm:$0xff]
        %v429 = vld [vmem:[%s345 + $0x110] sm:$0xff]
        %v430 = vld [vmem:[%s345 + $0x118] sm:$0xff]
        %v431 = vld [vmem:[%s345 + $0x120] sm:$0xff]
        %v432 = vld [vmem:[%s345 + $0x128] sm:$0xff]
        %v433 = vld [vmem:[%s345 + $0x130] sm:$0xff]
        %v434 = vld [vmem:[%s345 + $0x138] sm:$0xff]
        %v435 = vld [vmem:[%s345 + $0x140] sm:$0xff]
        %v436 = vld [vmem:[%s345 + $0x148] sm:$0xff]
        %v437 = vld [vmem:[%s345 + $0x150] sm:$0xff]
        %v438 = vld [vmem:[%s345 + $0x158] sm:$0xff]
        %v439 = vld [vmem:[%s345 + $0x160] sm:$0xff]
        %v440 = vld [vmem:[%s345 + $0x168] sm:$0xff]
        %v441 = vld [vmem:[%s345 + $0x170] sm:$0xff]
        %v442 = vld [vmem:[%s345 + $0x178] sm:$0xff]
        %v443 = vld [vmem:[%s345 + $0x180] sm:$0xff]
        %v444 = vld [vmem:[%s345 + $0x188] sm:$0xff]
        %v445 = vld [vmem:[%s345 + $0x190] sm:$0xff]
        %v446 = vld [vmem:[%s345 + $0x198] sm:$0xff]
        %v447 = vld [vmem:[%s345 + $0x1a0] sm:$0xff]
        %v448 = vld [vmem:[%s345 + $0x1a8] sm:$0xff]
        %v449 = vld [vmem:[%s345 + $0x1b0] sm:$0xff]
        %v450 = vld [vmem:[%s345 + $0x1b8] sm:$0xff]
        %v451 = vld [vmem:[%s345 + $0x1c0] sm:$0xff]
        %v452 = vld [vmem:[%s345 + $0x1c8] sm:$0xff]
        %v453 = vld [vmem:[%s345 + $0x1d0] sm:$0xff]
        %v454 = vld [vmem:[%s345 + $0x1d8] sm:$0xff]
        %v455 = vld [vmem:[%s345 + $0x1e0] sm:$0xff]
        %v456 = vld [vmem:[%s345 + $0x1e8] sm:$0xff]
        %v457 = vld [vmem:[%s345 + $0x1f0] sm:$0xff]
        %v458 = vld [vmem:[%s345 + $0x1f8] sm:$0xff]
        %v459 = vmul.f32 %v395, %v395
        %v460 = vmul.f32 %v396, %v396
        %v461 = vmul.f32 %v397, %v397
        %v462 = vmul.f32 %v398, %v398
        %v463 = vmul.f32 %v399, %v399
        %v464 = vmul.f32 %v400, %v400
        %v465 = vmul.f32 %v401, %v401
        %v466 = vmul.f32 %v402, %v402
        %v467 = vmul.f32 %v403, %v403
        %v468 = vmul.f32 %v404, %v404
        %v469 = vmul.f32 %v405, %v405
        %v470 = vmul.f32 %v406, %v406
        %v471 = vmul.f32 %v407, %v407
        %v472 = vmul.f32 %v408, %v408
        %v473 = vmul.f32 %v409, %v409
        %v474 = vmul.f32 %v410, %v410
        %v475 = vmul.f32 %v411, %v411
        %v476 = vmul.f32 %v412, %v412
        %v477 = vmul.f32 %v413, %v413
        %v478 = vmul.f32 %v414, %v414
        %v479 = vmul.f32 %v415, %v415
        %v480 = vmul.f32 %v416, %v416
        %v481 = vmul.f32 %v417, %v417
        %v482 = vmul.f32 %v418, %v418
        %v483 = vmul.f32 %v419, %v419
        %v484 = vmul.f32 %v420, %v420
        %v485 = vmul.f32 %v421, %v421
        %v486 = vmul.f32 %v422, %v422
        %v487 = vmul.f32 %v423, %v423
        %v488 = vmul.f32 %v424, %v424
        %v489 = vmul.f32 %v425, %v425
        %v490 = vmul.f32 %v426, %v426
        %v491 = vmul.f32 %v427, %v427
        %v492 = vmul.f32 %v428, %v428
        %v493 = vmul.f32 %v429, %v429
        %v494 = vmul.f32 %v430, %v430
        %v495 = vmul.f32 %v431, %v431
        %v496 = vmul.f32 %v432, %v432
        %v497 = vmul.f32 %v433, %v433
        %v498 = vmul.f32 %v434, %v434
        %v499 = vmul.f32 %v435, %v435
        %v500 = vmul.f32 %v436, %v436
        %v501 = vmul.f32 %v437, %v437
        %v502 = vmul.f32 %v438, %v438
        %v503 = vmul.f32 %v439, %v439
        %v504 = vmul.f32 %v440, %v440
        %v505 = vmul.f32 %v441, %v441
        %v506 = vmul.f32 %v442, %v442
        %v507 = vmul.f32 %v443, %v443
        %v508 = vmul.f32 %v444, %v444
        %v509 = vmul.f32 %v445, %v445
        %v510 = vmul.f32 %v446, %v446
        %v511 = vmul.f32 %v447, %v447
        %v512 = vmul.f32 %v448, %v448
        %v513 = vmul.f32 %v449, %v449
        %v514 = vmul.f32 %v450, %v450
        %v515 = vmul.f32 %v451, %v451
        %v516 = vmul.f32 %v452, %v452
        %v517 = vmul.f32 %v453, %v453
        %v518 = vmul.f32 %v454, %v454
        %v519 = vmul.f32 %v455, %v455
        %v520 = vmul.f32 %v456, %v456
        %v521 = vmul.f32 %v457, %v457
        %v522 = vmul.f32 %v458, %v458
        %v523 = vadd.f32 %v459, %v460
        %524 = vadd.xlane.f32.xlu0 %v523
        %v525 = vpop.xlane.xlu0 %524
        %v526 = vadd.f32 %v461, %v462
        %527 = vadd.xlane.f32.xlu0 %v526
        %v528 = vpop.xlane.xlu0 %527
        %v529 = vadd.f32 %v463, %v464
        %530 = vadd.xlane.f32.xlu0 %v529
        %v531 = vpop.xlane.xlu0 %530
        %v532 = vadd.f32 %v465, %v466
        %533 = vadd.xlane.f32.xlu0 %v532
        %v534 = vpop.xlane.xlu0 %533
        %v535 = vadd.f32 %v467, %v468
        %536 = vadd.xlane.f32.xlu0 %v535
        %v537 = vpop.xlane.xlu0 %536
        %v538 = vadd.f32 %v469, %v470
        %539 = vadd.xlane.f32.xlu0 %v538
        %v540 = vpop.xlane.xlu0 %539
        %v541 = vadd.f32 %v471, %v472
        %542 = vadd.xlane.f32.xlu0 %v541
        %v543 = vpop.xlane.xlu0 %542
        %v544 = vadd.f32 %v473, %v474
        %545 = vadd.xlane.f32.xlu0 %v544
        %v546 = vpop.xlane.xlu0 %545
        %v547 = vadd.f32 %v475, %v476
        %548 = vadd.xlane.f32.xlu0 %v547
        %v549 = vpop.xlane.xlu0 %548
        %v550 = vadd.f32 %v477, %v478
        %551 = vadd.xlane.f32.xlu0 %v550
        %v552 = vpop.xlane.xlu0 %551
        %v553 = vadd.f32 %v479, %v480
        %554 = vadd.xlane.f32.xlu0 %v553
        %v555 = vpop.xlane.xlu0 %554
        %v556 = vadd.f32 %v481, %v482
        %557 = vadd.xlane.f32.xlu0 %v556
        %v558 = vpop.xlane.xlu0 %557
        %v559 = vadd.f32 %v483, %v484
        %560 = vadd.xlane.f32.xlu0 %v559
        %v561 = vpop.xlane.xlu0 %560
        %v562 = vadd.f32 %v485, %v486
        %563 = vadd.xlane.f32.xlu0 %v562
        %v564 = vpop.xlane.xlu0 %563
        %v565 = vadd.f32 %v487, %v488
        %566 = vadd.xlane.f32.xlu0 %v565
        %v567 = vpop.xlane.xlu0 %566
        %v568 = vadd.f32 %v489, %v490
        %569 = vadd.xlane.f32.xlu0 %v568
        %v570 = vpop.xlane.xlu0 %569
        %v571 = vadd.f32 %v491, %v492
        %572 = vadd.xlane.f32.xlu0 %v571
        %v573 = vpop.xlane.xlu0 %572
        %v574 = vadd.f32 %v493, %v494
        %575 = vadd.xlane.f32.xlu0 %v574
        %v576 = vpop.xlane.xlu0 %575
        %v577 = vadd.f32 %v495, %v496
        %578 = vadd.xlane.f32.xlu0 %v577
        %v579 = vpop.xlane.xlu0 %578
        %v580 = vadd.f32 %v497, %v498
        %581 = vadd.xlane.f32.xlu0 %v580
        %v582 = vpop.xlane.xlu0 %581
        %v583 = vadd.f32 %v499, %v500
        %584 = vadd.xlane.f32.xlu0 %v583
        %v585 = vpop.xlane.xlu0 %584
        %v586 = vadd.f32 %v501, %v502
        %587 = vadd.xlane.f32.xlu0 %v586
        %v588 = vpop.xlane.xlu0 %587
        %v589 = vadd.f32 %v503, %v504
        %590 = vadd.xlane.f32.xlu0 %v589
        %v591 = vpop.xlane.xlu0 %590
        %v592 = vadd.f32 %v505, %v506
        %593 = vadd.xlane.f32.xlu0 %v592
        %v594 = vpop.xlane.xlu0 %593
        %v595 = vadd.f32 %v507, %v508
        %596 = vadd.xlane.f32.xlu0 %v595
        %v597 = vpop.xlane.xlu0 %596
        %v598 = vadd.f32 %v509, %v510
        %599 = vadd.xlane.f32.xlu0 %v598
        %v600 = vpop.xlane.xlu0 %599
        %v601 = vadd.f32 %v511, %v512
        %602 = vadd.xlane.f32.xlu0 %v601
        %v603 = vpop.xlane.xlu0 %602
        %v604 = vadd.f32 %v513, %v514
        %605 = vadd.xlane.f32.xlu0 %v604
        %v606 = vpop.xlane.xlu0 %605
        %v607 = vadd.f32 %v515, %v516
        %608 = vadd.xlane.f32.xlu0 %v607
        %v609 = vpop.xlane.xlu0 %608
        %v610 = vadd.f32 %v517, %v518
        %611 = vadd.xlane.f32.xlu0 %v610
        %v612 = vpop.xlane.xlu0 %611
        %v613 = vadd.f32 %v519, %v520
        %614 = vadd.xlane.f32.xlu0 %v613
        %v615 = vpop.xlane.xlu0 %614
        %v616 = vadd.f32 %v521, %v522
        %617 = vadd.xlane.f32.xlu0 %v616
        %v618 = vpop.xlane.xlu0 %617
        %v619 = vmax.f32 %v525, 1e-24
        %v620 = vmax.f32 %v528, 1e-24
        %v621 = vmax.f32 %v531, 1e-24
        %v622 = vmax.f32 %v534, 1e-24
        %v623 = vmax.f32 %v537, 1e-24
        %v624 = vmax.f32 %v540, 1e-24
        %v625 = vmax.f32 %v543, 1e-24
        %v626 = vmax.f32 %v546, 1e-24
        %v627 = vmax.f32 %v549, 1e-24
        %v628 = vmax.f32 %v552, 1e-24
        %v629 = vmax.f32 %v555, 1e-24
        %v630 = vmax.f32 %v558, 1e-24
        %v631 = vmax.f32 %v561, 1e-24
        %v632 = vmax.f32 %v564, 1e-24
        %v633 = vmax.f32 %v567, 1e-24
        %v634 = vmax.f32 %v570, 1e-24
        %v635 = vmax.f32 %v573, 1e-24
        %v636 = vmax.f32 %v576, 1e-24
        %v637 = vmax.f32 %v579, 1e-24
        %v638 = vmax.f32 %v582, 1e-24
        %v639 = vmax.f32 %v585, 1e-24
        %v640 = vmax.f32 %v588, 1e-24
        %v641 = vmax.f32 %v591, 1e-24
        %v642 = vmax.f32 %v594, 1e-24
        %v643 = vmax.f32 %v597, 1e-24
        %v644 = vmax.f32 %v600, 1e-24
        %v645 = vmax.f32 %v603, 1e-24
        %v646 = vmax.f32 %v606, 1e-24
        %v647 = vmax.f32 %v609, 1e-24
        %v648 = vmax.f32 %v612, 1e-24
        %v649 = vmax.f32 %v615, 1e-24
        %v650 = vmax.f32 %v618, 1e-24
        %v651 = vrsqrt.pop %v619
        %v652 = vrsqrt.pop %v620
        %v653 = vrsqrt.pop %v621
        %v654 = vrsqrt.pop %v622
        %v655 = vrsqrt.pop %v623
        %v656 = vrsqrt.pop %v624
        %v657 = vrsqrt.pop %v625
        %v658 = vrsqrt.pop %v626
        %v659 = vrsqrt.pop %v627
        %v660 = vrsqrt.pop %v628
        %v661 = vrsqrt.pop %v629
        %v662 = vrsqrt.pop %v630
        %v663 = vrsqrt.pop %v631
        %v664 = vrsqrt.pop %v632
        %v665 = vrsqrt.pop %v633
        %v666 = vrsqrt.pop %v634
        %v667 = vrsqrt.pop %v635
        %v668 = vrsqrt.pop %v636
        %v669 = vrsqrt.pop %v637
        %v670 = vrsqrt.pop %v638
        %v671 = vrsqrt.pop %v639
        %v672 = vrsqrt.pop %v640
        %v673 = vrsqrt.pop %v641
        %v674 = vrsqrt.pop %v642
        %v675 = vrsqrt.pop %v643
        %v676 = vrsqrt.pop %v644
        %v677 = vrsqrt.pop %v645
        %v678 = vrsqrt.pop %v646
        %v679 = vrsqrt.pop %v647
        %v680 = vrsqrt.pop %v648
        %v681 = vrsqrt.pop %v649
        %v682 = vrsqrt.pop %v650
        %v683 = vmul.f32 %v395, %v651
        %v684 = vmul.f32 %v396, %v651
        %v685 = vmul.f32 %v397, %v652
        %v686 = vmul.f32 %v398, %v652
        %v687 = vmul.f32 %v399, %v653
        %v688 = vmul.f32 %v400, %v653
        %v689 = vmul.f32 %v401, %v654
        %v690 = vmul.f32 %v402, %v654
        %v691 = vmul.f32 %v403, %v655
        %v692 = vmul.f32 %v404, %v655
        %v693 = vmul.f32 %v405, %v656
        %v694 = vmul.f32 %v406, %v656
        %v695 = vmul.f32 %v407, %v657
        %v696 = vmul.f32 %v408, %v657
        %v697 = vmul.f32 %v409, %v658
        %v698 = vmul.f32 %v410, %v658
        %v699 = vmul.f32 %v411, %v659
        %v700 = vmul.f32 %v412, %v659
        %v701 = vmul.f32 %v413, %v660
        %v702 = vmul.f32 %v414, %v660
        %v703 = vmul.f32 %v415, %v661
        %v704 = vmul.f32 %v416, %v661
        %v705 = vmul.f32 %v417, %v662
        %v706 = vmul.f32 %v418, %v662
        %v707 = vmul.f32 %v419, %v663
        %v708 = vmul.f32 %v420, %v663
        %v709 = vmul.f32 %v421, %v664
        %v710 = vmul.f32 %v422, %v664
        %v711 = vmul.f32 %v423, %v665
        %v712 = vmul.f32 %v424, %v665
        %v713 = vmul.f32 %v425, %v666
        %v714 = vmul.f32 %v426, %v666
        %v715 = vmul.f32 %v427, %v667
        %v716 = vmul.f32 %v428, %v667
        %v717 = vmul.f32 %v429, %v668
        %v718 = vmul.f32 %v430, %v668
        %v719 = vmul.f32 %v431, %v669
        %v720 = vmul.f32 %v432, %v669
        %v721 = vmul.f32 %v433, %v670
        %v722 = vmul.f32 %v434, %v670
        %v723 = vmul.f32 %v435, %v671
        %v724 = vmul.f32 %v436, %v671
        %v725 = vmul.f32 %v437, %v672
        %v726 = vmul.f32 %v438, %v672
        %v727 = vmul.f32 %v439, %v673
        %v728 = vmul.f32 %v440, %v673
        %v729 = vmul.f32 %v441, %v674
        %v730 = vmul.f32 %v442, %v674
        %v731 = vmul.f32 %v443, %v675
        %v732 = vmul.f32 %v444, %v675
        %v733 = vmul.f32 %v445, %v676
        %v734 = vmul.f32 %v446, %v676
        %v735 = vmul.f32 %v447, %v677
        %v736 = vmul.f32 %v448, %v677
        %v737 = vmul.f32 %v449, %v678
        %v738 = vmul.f32 %v450, %v678
        %v739 = vmul.f32 %v451, %v679
        %v740 = vmul.f32 %v452, %v679
        %v741 = vmul.f32 %v453, %v680
        %v742 = vmul.f32 %v454, %v680
        %v743 = vmul.f32 %v455, %v681
        %v744 = vmul.f32 %v456, %v681
        %v745 = vmul.f32 %v457, %v682
        %v746 = vmul.f32 %v458, %v682
        %v747 = vld [vmem:[%s1] sm:$0xff]
        %v748 = vld [vmem:[%s1 + $0x8] sm:$0xff]
        %v749 = vld [vmem:[%s1 + $0x10] sm:$0xff]
        %v750 = vld [vmem:[%s1 + $0x18] sm:$0xff]
        %v751 = vld [vmem:[%s1 + $0x20] sm:$0xff]
        %v752 = vld [vmem:[%s1 + $0x28] sm:$0xff]
        %v753 = vld [vmem:[%s1 + $0x30] sm:$0xff]
        %v754 = vld [vmem:[%s1 + $0x38] sm:$0xff]
        %v755 = vld [vmem:[%s1 + $0x40] sm:$0xff]
        %v756 = vld [vmem:[%s1 + $0x48] sm:$0xff]
        %v757 = vld [vmem:[%s1 + $0x50] sm:$0xff]
        %v758 = vld [vmem:[%s1 + $0x58] sm:$0xff]
        %v759 = vld [vmem:[%s1 + $0x60] sm:$0xff]
        %v760 = vld [vmem:[%s1 + $0x68] sm:$0xff]
        %v761 = vld [vmem:[%s1 + $0x70] sm:$0xff]
        %v762 = vld [vmem:[%s1 + $0x78] sm:$0xff]
        %v763 = vld [vmem:[%s1 + $0x80] sm:$0xff]
        %v764 = vld [vmem:[%s1 + $0x88] sm:$0xff]
        %v765 = vld [vmem:[%s1 + $0x90] sm:$0xff]
        %v766 = vld [vmem:[%s1 + $0x98] sm:$0xff]
        %v767 = vld [vmem:[%s1 + $0xa0] sm:$0xff]
        %v768 = vld [vmem:[%s1 + $0xa8] sm:$0xff]
        %v769 = vld [vmem:[%s1 + $0xb0] sm:$0xff]
        %v770 = vld [vmem:[%s1 + $0xb8] sm:$0xff]
        %v771 = vld [vmem:[%s1 + $0xc0] sm:$0xff]
        %v772 = vld [vmem:[%s1 + $0xc8] sm:$0xff]
        %v773 = vld [vmem:[%s1 + $0xd0] sm:$0xff]
        %v774 = vld [vmem:[%s1 + $0xd8] sm:$0xff]
        %v775 = vld [vmem:[%s1 + $0xe0] sm:$0xff]
        %v776 = vld [vmem:[%s1 + $0xe8] sm:$0xff]
        %v777 = vld [vmem:[%s1 + $0xf0] sm:$0xff]
        %v778 = vld [vmem:[%s1 + $0xf8] sm:$0xff]
        %v779 = vld [vmem:[%s2] sm:$0x1]
        %v781 = vlaneseq
        %v782 = vshrl.u32 %v781, 7
        %v783 = vsub.s32 0, %v782
        %v784 = vrot.slane %v779, %v783
        %786 = vmatprep.subr.mxu0 0.0
        %787 = vmatpush1.msra.mxu0 %v762
        %788 = vmatprep.subr.mxu0 0.0
        %789 = vmatpush1.msra.mxu0 %v761
        %790 = vmatprep.subr.mxu0 0.0
        %791 = vmatpush1.msra.mxu0 %v760
        %792 = vmatprep.subr.mxu0 0.0
        %793 = vmatpush1.msra.mxu0 %v759
        %794 = vmatprep.subr.mxu0 0.0
        %795 = vmatpush1.msra.mxu0 %v758
        %796 = vmatprep.subr.mxu0 0.0
        %797 = vmatpush1.msra.mxu0 %v757
        %798 = vmatprep.subr.mxu0 0.0
        %799 = vmatpush1.msra.mxu0 %v756
        %800 = vmatprep.subr.mxu0 0.0
        %801 = vmatpush1.msra.mxu0 %v755
        %802 = vmatprep.subr.mxu0 0.0
        %803 = vmatpush1.msra.mxu0 %v754
        %804 = vmatprep.subr.mxu0 0.0
        %805 = vmatpush1.msra.mxu0 %v753
        %806 = vmatprep.subr.mxu0 0.0
        %807 = vmatpush1.msra.mxu0 %v752
        %808 = vmatprep.subr.mxu0 0.0
        %809 = vmatpush1.msra.mxu0 %v751
        %810 = vmatprep.subr.mxu0 0.0
        %811 = vmatpush1.msra.mxu0 %v750
        %812 = vmatprep.subr.mxu0 0.0
        %813 = vmatpush1.msra.mxu0 %v749
        %814 = vmatprep.subr.mxu0 0.0
        %815 = vmatpush1.msra.mxu0 %v748
        %816 = vmatprep.subr.mxu0 0.0
        %817 = vmatpush1.msra.mxu0 %v747
        %818 = vmatprep.subr.mxu0 0.0
        %819 = vmatpush2.msra.mxu0 %v778
        %820 = vmatprep.subr.mxu0 0.0
        %821 = vmatpush2.msra.mxu0 %v777
        %822 = vmatprep.subr.mxu0 0.0
        %823 = vmatpush2.msra.mxu0 %v776
        %824 = vmatprep.subr.mxu0 0.0
        %825 = vmatpush2.msra.mxu0 %v775
        %826 = vmatprep.subr.mxu0 0.0
        %827 = vmatpush2.msra.mxu0 %v774
        %828 = vmatprep.subr.mxu0 0.0
        %829 = vmatpush2.msra.mxu0 %v773
        %830 = vmatprep.subr.mxu0 0.0
        %831 = vmatpush2.msra.mxu0 %v772
        %832 = vmatprep.subr.mxu0 0.0
        %833 = vmatpush2.msra.mxu0 %v771
        %834 = vmatprep.subr.mxu0 0.0
        %835 = vmatpush2.msra.mxu0 %v770
        %836 = vmatprep.subr.mxu0 0.0
        %837 = vmatpush2.msra.mxu0 %v769
        %838 = vmatprep.subr.mxu0 0.0
        %839 = vmatpush2.msra.mxu0 %v768
        %840 = vmatprep.subr.mxu0 0.0
        %841 = vmatpush2.msra.mxu0 %v767
        %842 = vmatprep.subr.mxu0 0.0
        %843 = vmatpush2.msra.mxu0 %v766
        %844 = vmatprep.subr.mxu0 0.0
        %845 = vmatpush2.msra.mxu0 %v765
        %846 = vmatprep.subr.mxu0 0.0
        %847 = vmatpush2.msra.mxu0 %v764
        %848 = vmatprep.subr.mxu0 0.0
        %849 = vmatpush2.msra.mxu0 %v763
        %850 = vmatprep.mubr.f32.mxu0 %v684
        %851 = vmatmul.mubr.f32.gmra.mxu0 %v683
        %v852 = vpop.f32.mrf.mxu0
        %v853 = vadd.f32 %v784, %v852
        %v854 = vpop.f32.mrf.mxu0
        %855 = vmatprep.mubr.f32.mxu0 %v686
        %856 = vmatmul.mubr.f32.gmra.mxu0 %v685
        %v857 = vpop.f32.mrf.mxu0
        %v858 = vadd.f32 %v784, %v857
        %v859 = vpop.f32.mrf.mxu0
        %860 = vmatprep.mubr.f32.mxu0 %v688
        %861 = vmatmul.mubr.f32.gmra.mxu0 %v687
        %v862 = vpop.f32.mrf.mxu0
        %v863 = vadd.f32 %v784, %v862
        %v864 = vpop.f32.mrf.mxu0
        %865 = vmatprep.mubr.f32.mxu0 %v690
        %866 = vmatmul.mubr.f32.gmra.mxu0 %v689
        %v867 = vpop.f32.mrf.mxu0
        %v868 = vadd.f32 %v784, %v867
        %v869 = vpop.f32.mrf.mxu0
        %870 = vmatprep.mubr.f32.mxu0 %v692
        %871 = vmatmul.mubr.f32.gmra.mxu0 %v691
        %v872 = vpop.f32.mrf.mxu0
        %v873 = vadd.f32 %v784, %v872
        %v874 = vpop.f32.mrf.mxu0
        %875 = vmatprep.mubr.f32.mxu0 %v694
        %876 = vmatmul.mubr.f32.gmra.mxu0 %v693
        %v877 = vpop.f32.mrf.mxu0
        %v878 = vadd.f32 %v784, %v877
        %v879 = vpop.f32.mrf.mxu0
        %880 = vmatprep.mubr.f32.mxu0 %v696
        %881 = vmatmul.mubr.f32.gmra.mxu0 %v695
        %v882 = vpop.f32.mrf.mxu0
        %v883 = vadd.f32 %v784, %v882
        %v884 = vpop.f32.mrf.mxu0
        %885 = vmatprep.mubr.f32.mxu0 %v698
        %886 = vmatmul.mubr.f32.gmra.mxu0 %v697
        %v887 = vpop.f32.mrf.mxu0
        %v888 = vadd.f32 %v784, %v887
        %v889 = vpop.f32.mrf.mxu0
        %890 = vmatprep.mubr.f32.mxu0 %v700
        %891 = vmatmul.mubr.f32.gmra.mxu0 %v699
        %v892 = vpop.f32.mrf.mxu0
        %v893 = vadd.f32 %v784, %v892
        %v894 = vpop.f32.mrf.mxu0
        %895 = vmatprep.mubr.f32.mxu0 %v702
        %896 = vmatmul.mubr.f32.gmra.mxu0 %v701
        %v897 = vpop.f32.mrf.mxu0
        %v898 = vadd.f32 %v784, %v897
        %v899 = vpop.f32.mrf.mxu0
        %900 = vmatprep.mubr.f32.mxu0 %v704
        %901 = vmatmul.mubr.f32.gmra.mxu0 %v703
        %v902 = vpop.f32.mrf.mxu0
        %v903 = vadd.f32 %v784, %v902
        %v904 = vpop.f32.mrf.mxu0
        %905 = vmatprep.mubr.f32.mxu0 %v706
        %906 = vmatmul.mubr.f32.gmra.mxu0 %v705
        %v907 = vpop.f32.mrf.mxu0
        %v908 = vadd.f32 %v784, %v907
        %v909 = vpop.f32.mrf.mxu0
        %910 = vmatprep.mubr.f32.mxu0 %v708
        %911 = vmatmul.mubr.f32.gmra.mxu0 %v707
        %v912 = vpop.f32.mrf.mxu0
        %v913 = vadd.f32 %v784, %v912
        %v914 = vpop.f32.mrf.mxu0
        %915 = vmatprep.mubr.f32.mxu0 %v710
        %916 = vmatmul.mubr.f32.gmra.mxu0 %v709
        %v917 = vpop.f32.mrf.mxu0
        %v918 = vadd.f32 %v784, %v917
        %v919 = vpop.f32.mrf.mxu0
        %920 = vmatprep.mubr.f32.mxu0 %v712
        %921 = vmatmul.mubr.f32.gmra.mxu0 %v711
        %v922 = vpop.f32.mrf.mxu0
        %v923 = vadd.f32 %v784, %v922
        %v924 = vpop.f32.mrf.mxu0
        %925 = vmatprep.mubr.f32.mxu0 %v714
        %926 = vmatmul.mubr.f32.gmra.mxu0 %v713
        %v927 = vpop.f32.mrf.mxu0
        %v928 = vadd.f32 %v784, %v927
        %v929 = vpop.f32.mrf.mxu0
        %930 = vmatprep.mubr.f32.mxu0 %v716
        %931 = vmatmul.mubr.f32.gmra.mxu0 %v715
        %v932 = vpop.f32.mrf.mxu0
        %v933 = vadd.f32 %v784, %v932
        %v934 = vpop.f32.mrf.mxu0
        %935 = vmatprep.mubr.f32.mxu0 %v718
        %936 = vmatmul.mubr.f32.gmra.mxu0 %v717
        %v937 = vpop.f32.mrf.mxu0
        %v938 = vadd.f32 %v784, %v937
        %v939 = vpop.f32.mrf.mxu0
        %940 = vmatprep.mubr.f32.mxu0 %v720
        %941 = vmatmul.mubr.f32.gmra.mxu0 %v719
        %v942 = vpop.f32.mrf.mxu0
        %v943 = vadd.f32 %v784, %v942
        %v944 = vpop.f32.mrf.mxu0
        %945 = vmatprep.mubr.f32.mxu0 %v722
        %946 = vmatmul.mubr.f32.gmra.mxu0 %v721
        %v947 = vpop.f32.mrf.mxu0
        %v948 = vadd.f32 %v784, %v947
        %v949 = vpop.f32.mrf.mxu0
        %950 = vmatprep.mubr.f32.mxu0 %v724
        %951 = vmatmul.mubr.f32.gmra.mxu0 %v723
        %v952 = vpop.f32.mrf.mxu0
        %v953 = vadd.f32 %v784, %v952
        %v954 = vpop.f32.mrf.mxu0
        %955 = vmatprep.mubr.f32.mxu0 %v726
        %956 = vmatmul.mubr.f32.gmra.mxu0 %v725
        %v957 = vpop.f32.mrf.mxu0
        %v958 = vadd.f32 %v784, %v957
        %v959 = vpop.f32.mrf.mxu0
        %960 = vmatprep.mubr.f32.mxu0 %v728
        %961 = vmatmul.mubr.f32.gmra.mxu0 %v727
        %v962 = vpop.f32.mrf.mxu0
        %v963 = vadd.f32 %v784, %v962
        %v964 = vpop.f32.mrf.mxu0
        %965 = vmatprep.mubr.f32.mxu0 %v730
        %966 = vmatmul.mubr.f32.gmra.mxu0 %v729
        %v967 = vpop.f32.mrf.mxu0
        %v968 = vadd.f32 %v784, %v967
        %v969 = vpop.f32.mrf.mxu0
        %970 = vmatprep.mubr.f32.mxu0 %v732
        %971 = vmatmul.mubr.f32.gmra.mxu0 %v731
        %v972 = vpop.f32.mrf.mxu0
        %v973 = vadd.f32 %v784, %v972
        %v974 = vpop.f32.mrf.mxu0
        %975 = vmatprep.mubr.f32.mxu0 %v734
        %976 = vmatmul.mubr.f32.gmra.mxu0 %v733
        %v977 = vpop.f32.mrf.mxu0
        %v978 = vadd.f32 %v784, %v977
        %v979 = vpop.f32.mrf.mxu0
        %980 = vmatprep.mubr.f32.mxu0 %v736
        %981 = vmatmul.mubr.f32.gmra.mxu0 %v735
        %v982 = vpop.f32.mrf.mxu0
        %v983 = vadd.f32 %v784, %v982
        %v984 = vpop.f32.mrf.mxu0
        %985 = vmatprep.mubr.f32.mxu0 %v738
        %986 = vmatmul.mubr.f32.gmra.mxu0 %v737
        %v987 = vpop.f32.mrf.mxu0
        %v988 = vadd.f32 %v784, %v987
        %v989 = vpop.f32.mrf.mxu0
        %990 = vmatprep.mubr.f32.mxu0 %v740
        %991 = vmatmul.mubr.f32.gmra.mxu0 %v739
        %v992 = vpop.f32.mrf.mxu0
        %v993 = vadd.f32 %v784, %v992
        %v994 = vpop.f32.mrf.mxu0
        %995 = vmatprep.mubr.f32.mxu0 %v742
        %996 = vmatmul.mubr.f32.gmra.mxu0 %v741
        %v997 = vpop.f32.mrf.mxu0
        %v998 = vadd.f32 %v784, %v997
        %v999 = vpop.f32.mrf.mxu0
        %1000 = vmatprep.mubr.f32.mxu0 %v744
        %1001 = vmatmul.mubr.f32.gmra.mxu0 %v743
        %v1002 = vpop.f32.mrf.mxu0
        %v1003 = vadd.f32 %v784, %v1002
        %v1004 = vpop.f32.mrf.mxu0
        %1005 = vmatprep.mubr.f32.mxu0 %v746
        %1006 = vmatmul.mubr.f32.gmra.mxu0 %v745
        %v1007 = vpop.f32.mrf.mxu0
        %v1008 = vadd.f32 %v784, %v1007
        %v1009 = vpop.f32.mrf.mxu0
        %1010 = vdwg.mxu0
        %v1011 = vtanh.pop %v853
        %v1012 = vtanh.pop %v858
        %v1013 = vtanh.pop %v863
        %v1014 = vtanh.pop %v868
        %v1015 = vtanh.pop %v873
        %v1016 = vtanh.pop %v878
        %v1017 = vtanh.pop %v883
        %v1018 = vtanh.pop %v888
        %v1019 = vtanh.pop %v893
        %v1020 = vtanh.pop %v898
        %v1021 = vtanh.pop %v903
        %v1022 = vtanh.pop %v908
        %v1023 = vtanh.pop %v913
        %v1024 = vtanh.pop %v918
        %v1025 = vtanh.pop %v923
        %v1026 = vtanh.pop %v928
        %v1027 = vtanh.pop %v933
        %v1028 = vtanh.pop %v938
        %v1029 = vtanh.pop %v943
        %v1030 = vtanh.pop %v948
        %v1031 = vtanh.pop %v953
        %v1032 = vtanh.pop %v958
        %v1033 = vtanh.pop %v963
        %v1034 = vtanh.pop %v968
        %v1035 = vtanh.pop %v973
        %v1036 = vtanh.pop %v978
        %v1037 = vtanh.pop %v983
        %v1038 = vtanh.pop %v988
        %v1039 = vtanh.pop %v993
        %v1040 = vtanh.pop %v998
        %v1041 = vtanh.pop %v1003
        %v1042 = vtanh.pop %v1008
        %v1043 = vld [vmem:[%s3] sm:$0xff]
        %v1044 = vld [vmem:[%s3 + $0x8] sm:$0xff]
        %v1045 = vld [vmem:[%s3 + $0x10] sm:$0xff]
        %v1046 = vld [vmem:[%s3 + $0x18] sm:$0xff]
        %v1047 = vld [vmem:[%s3 + $0x20] sm:$0xff]
        %v1048 = vld [vmem:[%s3 + $0x28] sm:$0xff]
        %v1049 = vld [vmem:[%s3 + $0x30] sm:$0xff]
        %v1050 = vld [vmem:[%s3 + $0x38] sm:$0xff]
        %v1051 = vld [vmem:[%s4] sm:$0x1]
        %v1053 = vlaneseq
        %v1054 = vshrl.u32 %v1053, 7
        %v1055 = vsub.s32 0, %v1054
        %v1056 = vrot.slane %v1051, %v1055
        %vm1058 = vcmask 523264
        %v1060 = vsel %vm1058, %v1011, 0
        %v1063 = vsel %vm1058, %v1012, 0
        %v1066 = vsel %vm1058, %v1013, 0
        %v1069 = vsel %vm1058, %v1014, 0
        %v1072 = vsel %vm1058, %v1015, 0
        %v1075 = vsel %vm1058, %v1016, 0
        %v1078 = vsel %vm1058, %v1017, 0
        %v1081 = vsel %vm1058, %v1018, 0
        %v1084 = vsel %vm1058, %v1019, 0
        %v1087 = vsel %vm1058, %v1020, 0
        %v1090 = vsel %vm1058, %v1021, 0
        %v1093 = vsel %vm1058, %v1022, 0
        %v1096 = vsel %vm1058, %v1023, 0
        %v1099 = vsel %vm1058, %v1024, 0
        %v1102 = vsel %vm1058, %v1025, 0
        %v1105 = vsel %vm1058, %v1026, 0
        %v1108 = vsel %vm1058, %v1027, 0
        %v1111 = vsel %vm1058, %v1028, 0
        %v1114 = vsel %vm1058, %v1029, 0
        %v1117 = vsel %vm1058, %v1030, 0
        %v1120 = vsel %vm1058, %v1031, 0
        %v1123 = vsel %vm1058, %v1032, 0
        %v1126 = vsel %vm1058, %v1033, 0
        %v1129 = vsel %vm1058, %v1034, 0
        %v1132 = vsel %vm1058, %v1035, 0
        %v1135 = vsel %vm1058, %v1036, 0
        %v1138 = vsel %vm1058, %v1037, 0
        %v1141 = vsel %vm1058, %v1038, 0
        %v1144 = vsel %vm1058, %v1039, 0
        %v1147 = vsel %vm1058, %v1040, 0
        %v1150 = vsel %vm1058, %v1041, 0
        %v1153 = vsel %vm1058, %v1042, 0
        %1155 = vmatprep.subr.mxu0 0.0
        %1156 = vmatpush1.msra.mxu0 0.0
        %1157 = vmatprep.subr.mxu0 0.0
        %1158 = vmatpush1.msra.mxu0 0.0
        %1159 = vmatprep.subr.mxu0 0.0
        %1160 = vmatpush1.msra.mxu0 0.0
        %1161 = vmatprep.subr.mxu0 0.0
        %1162 = vmatpush1.msra.mxu0 0.0
        %1163 = vmatprep.subr.mxu0 0.0
        %1164 = vmatpush1.msra.mxu0 0.0
        %1165 = vmatprep.subr.mxu0 0.0
        %1166 = vmatpush1.msra.mxu0 0.0
        %1167 = vmatprep.subr.mxu0 0.0
        %1168 = vmatpush1.msra.mxu0 0.0
        %1169 = vmatprep.subr.mxu0 0.0
        %1170 = vmatpush1.msra.mxu0 0.0
        %1171 = vmatprep.subr.mxu0 0.0
        %1172 = vmatpush1.msra.mxu0 %v1050
        %1173 = vmatprep.subr.mxu0 0.0
        %1174 = vmatpush1.msra.mxu0 %v1049
        %1175 = vmatprep.subr.mxu0 0.0
        %1176 = vmatpush1.msra.mxu0 %v1048
        %1177 = vmatprep.subr.mxu0 0.0
        %1178 = vmatpush1.msra.mxu0 %v1047
        %1179 = vmatprep.subr.mxu0 0.0
        %1180 = vmatpush1.msra.mxu0 %v1046
        %1181 = vmatprep.subr.mxu0 0.0
        %1182 = vmatpush1.msra.mxu0 %v1045
        %1183 = vmatprep.subr.mxu0 0.0
        %1184 = vmatpush1.msra.mxu0 %v1044
        %1185 = vmatprep.subr.mxu0 0.0
        %1186 = vmatpush1.msra.mxu0 %v1043
        %1187 = vmatprep.subr.mxu0 0.0
        %1188 = vmatpush2.msra.mxu0 0.0
        %1189 = vmatprep.subr.mxu0 0.0
        %1190 = vmatpush2.msra.mxu0 0.0
        %1191 = vmatprep.subr.mxu0 0.0
        %1192 = vmatpush2.msra.mxu0 0.0
        %1193 = vmatprep.subr.mxu0 0.0
        %1194 = vmatpush2.msra.mxu0 0.0
        %1195 = vmatprep.subr.mxu0 0.0
        %1196 = vmatpush2.msra.mxu0 0.0
        %1197 = vmatprep.subr.mxu0 0.0
        %1198 = vmatpush2.msra.mxu0 0.0
        %1199 = vmatprep.subr.mxu0 0.0
        %1200 = vmatpush2.msra.mxu0 0.0
        %1201 = vmatprep.subr.mxu0 0.0
        %1202 = vmatpush2.msra.mxu0 0.0
        %1203 = vmatprep.subr.mxu0 0.0
        %1204 = vmatpush2.msra.mxu0 0.0
        %1205 = vmatprep.subr.mxu0 0.0
        %1206 = vmatpush2.msra.mxu0 0.0
        %1207 = vmatprep.subr.mxu0 0.0
        %1208 = vmatpush2.msra.mxu0 0.0
        %1209 = vmatprep.subr.mxu0 0.0
        %1210 = vmatpush2.msra.mxu0 0.0
        %1211 = vmatprep.subr.mxu0 0.0
        %1212 = vmatpush2.msra.mxu0 0.0
        %1213 = vmatprep.subr.mxu0 0.0
        %1214 = vmatpush2.msra.mxu0 0.0
        %1215 = vmatprep.subr.mxu0 0.0
        %1216 = vmatpush2.msra.mxu0 0.0
        %1217 = vmatprep.subr.mxu0 0.0
        %1218 = vmatpush2.msra.mxu0 0.0
        %1219 = vmatprep.mubr.f32.mxu0 0.0
        %1220 = vmatmul.mubr.f32.gmra.mxu0 %v1060
        %v1221 = vpop.f32.mrf.mxu0
        %v1222 = vadd.f32 %v1056, %v1221
        %v1223 = vpop.f32.mrf.mxu0
        %1224 = vmatprep.mubr.f32.mxu0 0.0
        %1225 = vmatmul.mubr.f32.gmra.mxu0 %v1063
        %v1226 = vpop.f32.mrf.mxu0
        %v1227 = vadd.f32 %v1056, %v1226
        %v1228 = vpop.f32.mrf.mxu0
        %1229 = vmatprep.mubr.f32.mxu0 0.0
        %1230 = vmatmul.mubr.f32.gmra.mxu0 %v1066
        %v1231 = vpop.f32.mrf.mxu0
        %v1232 = vadd.f32 %v1056, %v1231
        %v1233 = vpop.f32.mrf.mxu0
        %1234 = vmatprep.mubr.f32.mxu0 0.0
        %1235 = vmatmul.mubr.f32.gmra.mxu0 %v1069
        %v1236 = vpop.f32.mrf.mxu0
        %v1237 = vadd.f32 %v1056, %v1236
        %v1238 = vpop.f32.mrf.mxu0
        %1239 = vmatprep.mubr.f32.mxu0 0.0
        %1240 = vmatmul.mubr.f32.gmra.mxu0 %v1072
        %v1241 = vpop.f32.mrf.mxu0
        %v1242 = vadd.f32 %v1056, %v1241
        %v1243 = vpop.f32.mrf.mxu0
        %1244 = vmatprep.mubr.f32.mxu0 0.0
        %1245 = vmatmul.mubr.f32.gmra.mxu0 %v1075
        %v1246 = vpop.f32.mrf.mxu0
        %v1247 = vadd.f32 %v1056, %v1246
        %v1248 = vpop.f32.mrf.mxu0
        %1249 = vmatprep.mubr.f32.mxu0 0.0
        %1250 = vmatmul.mubr.f32.gmra.mxu0 %v1078
        %v1251 = vpop.f32.mrf.mxu0
        %v1252 = vadd.f32 %v1056, %v1251
        %v1253 = vpop.f32.mrf.mxu0
        %1254 = vmatprep.mubr.f32.mxu0 0.0
        %1255 = vmatmul.mubr.f32.gmra.mxu0 %v1081
        %v1256 = vpop.f32.mrf.mxu0
        %v1257 = vadd.f32 %v1056, %v1256
        %v1258 = vpop.f32.mrf.mxu0
        %1259 = vmatprep.mubr.f32.mxu0 0.0
        %1260 = vmatmul.mubr.f32.gmra.mxu0 %v1084
        %v1261 = vpop.f32.mrf.mxu0
        %v1262 = vadd.f32 %v1056, %v1261
        %v1263 = vpop.f32.mrf.mxu0
        %1264 = vmatprep.mubr.f32.mxu0 0.0
        %1265 = vmatmul.mubr.f32.gmra.mxu0 %v1087
        %v1266 = vpop.f32.mrf.mxu0
        %v1267 = vadd.f32 %v1056, %v1266
        %v1268 = vpop.f32.mrf.mxu0
        %1269 = vmatprep.mubr.f32.mxu0 0.0
        %1270 = vmatmul.mubr.f32.gmra.mxu0 %v1090
        %v1271 = vpop.f32.mrf.mxu0
        %v1272 = vadd.f32 %v1056, %v1271
        %v1273 = vpop.f32.mrf.mxu0
        %1274 = vmatprep.mubr.f32.mxu0 0.0
        %1275 = vmatmul.mubr.f32.gmra.mxu0 %v1093
        %v1276 = vpop.f32.mrf.mxu0
        %v1277 = vadd.f32 %v1056, %v1276
        %v1278 = vpop.f32.mrf.mxu0
        %1279 = vmatprep.mubr.f32.mxu0 0.0
        %1280 = vmatmul.mubr.f32.gmra.mxu0 %v1096
        %v1281 = vpop.f32.mrf.mxu0
        %v1282 = vadd.f32 %v1056, %v1281
        %v1283 = vpop.f32.mrf.mxu0
        %1284 = vmatprep.mubr.f32.mxu0 0.0
        %1285 = vmatmul.mubr.f32.gmra.mxu0 %v1099
        %v1286 = vpop.f32.mrf.mxu0
        %v1287 = vadd.f32 %v1056, %v1286
        %v1288 = vpop.f32.mrf.mxu0
        %1289 = vmatprep.mubr.f32.mxu0 0.0
        %1290 = vmatmul.mubr.f32.gmra.mxu0 %v1102
        %v1291 = vpop.f32.mrf.mxu0
        %v1292 = vadd.f32 %v1056, %v1291
        %v1293 = vpop.f32.mrf.mxu0
        %1294 = vmatprep.mubr.f32.mxu0 0.0
        %1295 = vmatmul.mubr.f32.gmra.mxu0 %v1105
        %v1296 = vpop.f32.mrf.mxu0
        %v1297 = vadd.f32 %v1056, %v1296
        %v1298 = vpop.f32.mrf.mxu0
        %1299 = vmatprep.mubr.f32.mxu0 0.0
        %1300 = vmatmul.mubr.f32.gmra.mxu0 %v1108
        %v1301 = vpop.f32.mrf.mxu0
        %v1302 = vadd.f32 %v1056, %v1301
        %v1303 = vpop.f32.mrf.mxu0
        %1304 = vmatprep.mubr.f32.mxu0 0.0
        %1305 = vmatmul.mubr.f32.gmra.mxu0 %v1111
        %v1306 = vpop.f32.mrf.mxu0
        %v1307 = vadd.f32 %v1056, %v1306
        %v1308 = vpop.f32.mrf.mxu0
        %1309 = vmatprep.mubr.f32.mxu0 0.0
        %1310 = vmatmul.mubr.f32.gmra.mxu0 %v1114
        %v1311 = vpop.f32.mrf.mxu0
        %v1312 = vadd.f32 %v1056, %v1311
        %v1313 = vpop.f32.mrf.mxu0
        %1314 = vmatprep.mubr.f32.mxu0 0.0
        %1315 = vmatmul.mubr.f32.gmra.mxu0 %v1117
        %v1316 = vpop.f32.mrf.mxu0
        %v1317 = vadd.f32 %v1056, %v1316
        %v1318 = vpop.f32.mrf.mxu0
        %1319 = vmatprep.mubr.f32.mxu0 0.0
        %1320 = vmatmul.mubr.f32.gmra.mxu0 %v1120
        %v1321 = vpop.f32.mrf.mxu0
        %v1322 = vadd.f32 %v1056, %v1321
        %v1323 = vpop.f32.mrf.mxu0
        %1324 = vmatprep.mubr.f32.mxu0 0.0
        %1325 = vmatmul.mubr.f32.gmra.mxu0 %v1123
        %v1326 = vpop.f32.mrf.mxu0
        %v1327 = vadd.f32 %v1056, %v1326
        %v1328 = vpop.f32.mrf.mxu0
        %1329 = vmatprep.mubr.f32.mxu0 0.0
        %1330 = vmatmul.mubr.f32.gmra.mxu0 %v1126
        %v1331 = vpop.f32.mrf.mxu0
        %v1332 = vadd.f32 %v1056, %v1331
        %v1333 = vpop.f32.mrf.mxu0
        %1334 = vmatprep.mubr.f32.mxu0 0.0
        %1335 = vmatmul.mubr.f32.gmra.mxu0 %v1129
        %v1336 = vpop.f32.mrf.mxu0
        %v1337 = vadd.f32 %v1056, %v1336
        %v1338 = vpop.f32.mrf.mxu0
        %1339 = vmatprep.mubr.f32.mxu0 0.0
        %1340 = vmatmul.mubr.f32.gmra.mxu0 %v1132
        %v1341 = vpop.f32.mrf.mxu0
        %v1342 = vadd.f32 %v1056, %v1341
        %v1343 = vpop.f32.mrf.mxu0
        %1344 = vmatprep.mubr.f32.mxu0 0.0
        %1345 = vmatmul.mubr.f32.gmra.mxu0 %v1135
        %v1346 = vpop.f32.mrf.mxu0
        %v1347 = vadd.f32 %v1056, %v1346
        %v1348 = vpop.f32.mrf.mxu0
        %1349 = vmatprep.mubr.f32.mxu0 0.0
        %1350 = vmatmul.mubr.f32.gmra.mxu0 %v1138
        %v1351 = vpop.f32.mrf.mxu0
        %v1352 = vadd.f32 %v1056, %v1351
        %v1353 = vpop.f32.mrf.mxu0
        %1354 = vmatprep.mubr.f32.mxu0 0.0
        %1355 = vmatmul.mubr.f32.gmra.mxu0 %v1141
        %v1356 = vpop.f32.mrf.mxu0
        %v1357 = vadd.f32 %v1056, %v1356
        %v1358 = vpop.f32.mrf.mxu0
        %1359 = vmatprep.mubr.f32.mxu0 0.0
        %1360 = vmatmul.mubr.f32.gmra.mxu0 %v1144
        %v1361 = vpop.f32.mrf.mxu0
        %v1362 = vadd.f32 %v1056, %v1361
        %v1363 = vpop.f32.mrf.mxu0
        %1364 = vmatprep.mubr.f32.mxu0 0.0
        %1365 = vmatmul.mubr.f32.gmra.mxu0 %v1147
        %v1366 = vpop.f32.mrf.mxu0
        %v1367 = vadd.f32 %v1056, %v1366
        %v1368 = vpop.f32.mrf.mxu0
        %1369 = vmatprep.mubr.f32.mxu0 0.0
        %1370 = vmatmul.mubr.f32.gmra.mxu0 %v1150
        %v1371 = vpop.f32.mrf.mxu0
        %v1372 = vadd.f32 %v1056, %v1371
        %v1373 = vpop.f32.mrf.mxu0
        %1374 = vmatprep.mubr.f32.mxu0 0.0
        %1375 = vmatmul.mubr.f32.gmra.mxu0 %v1153
        %v1376 = vpop.f32.mrf.mxu0
        %v1377 = vadd.f32 %v1056, %v1376
        %v1378 = vpop.f32.mrf.mxu0
        %1379 = vdwg.mxu0
        %1380 = vst.msk [vmem:[%s393] sm:$0xff] %vm1058, %v1222
        %1381 = vst.msk [vmem:[%s393 + $0x8] sm:$0xff] %vm1058, %v1227
        %1382 = vst.msk [vmem:[%s393 + $0x10] sm:$0xff] %vm1058, %v1232
        %1383 = vst.msk [vmem:[%s393 + $0x18] sm:$0xff] %vm1058, %v1237
        %1384 = vst.msk [vmem:[%s393 + $0x20] sm:$0xff] %vm1058, %v1242
        %1385 = vst.msk [vmem:[%s393 + $0x28] sm:$0xff] %vm1058, %v1247
        %1386 = vst.msk [vmem:[%s393 + $0x30] sm:$0xff] %vm1058, %v1252
        %1387 = vst.msk [vmem:[%s393 + $0x38] sm:$0xff] %vm1058, %v1257
        %1388 = vst.msk [vmem:[%s393 + $0x40] sm:$0xff] %vm1058, %v1262
        %1389 = vst.msk [vmem:[%s393 + $0x48] sm:$0xff] %vm1058, %v1267
        %1390 = vst.msk [vmem:[%s393 + $0x50] sm:$0xff] %vm1058, %v1272
        %1391 = vst.msk [vmem:[%s393 + $0x58] sm:$0xff] %vm1058, %v1277
        %1392 = vst.msk [vmem:[%s393 + $0x60] sm:$0xff] %vm1058, %v1282
        %1393 = vst.msk [vmem:[%s393 + $0x68] sm:$0xff] %vm1058, %v1287
        %1394 = vst.msk [vmem:[%s393 + $0x70] sm:$0xff] %vm1058, %v1292
        %1395 = vst.msk [vmem:[%s393 + $0x78] sm:$0xff] %vm1058, %v1297
        %1396 = vst.msk [vmem:[%s393 + $0x80] sm:$0xff] %vm1058, %v1302
        %1397 = vst.msk [vmem:[%s393 + $0x88] sm:$0xff] %vm1058, %v1307
        %1398 = vst.msk [vmem:[%s393 + $0x90] sm:$0xff] %vm1058, %v1312
        %1399 = vst.msk [vmem:[%s393 + $0x98] sm:$0xff] %vm1058, %v1317
        %1400 = vst.msk [vmem:[%s393 + $0xa0] sm:$0xff] %vm1058, %v1322
        %1401 = vst.msk [vmem:[%s393 + $0xa8] sm:$0xff] %vm1058, %v1327
        %1402 = vst.msk [vmem:[%s393 + $0xb0] sm:$0xff] %vm1058, %v1332
        %1403 = vst.msk [vmem:[%s393 + $0xb8] sm:$0xff] %vm1058, %v1337
        %1404 = vst.msk [vmem:[%s393 + $0xc0] sm:$0xff] %vm1058, %v1342
        %1405 = vst.msk [vmem:[%s393 + $0xc8] sm:$0xff] %vm1058, %v1347
        %1406 = vst.msk [vmem:[%s393 + $0xd0] sm:$0xff] %vm1058, %v1352
        %1407 = vst.msk [vmem:[%s393 + $0xd8] sm:$0xff] %vm1058, %v1357
        %1408 = vst.msk [vmem:[%s393 + $0xe0] sm:$0xff] %vm1058, %v1362
        %1409 = vst.msk [vmem:[%s393 + $0xe8] sm:$0xff] %vm1058, %v1367
        %1410 = vst.msk [vmem:[%s393 + $0xf0] sm:$0xff] %vm1058, %v1372
        %1411 = vst.msk [vmem:[%s393 + $0xf8] sm:$0xff] %vm1058, %v1377
        %v1412 = vld [vmem:[%s5] sm:$0xff]
        %v1413 = vld [vmem:[%s5 + $0x8] sm:$0xff]
        %v1414 = vld [vmem:[%s5 + $0x10] sm:$0xff]
        %v1415 = vld [vmem:[%s5 + $0x18] sm:$0xff]
        %v1416 = vld [vmem:[%s6] sm:$0x1]
        %v1418 = vlaneseq
        %v1419 = vshrl.u32 %v1418, 7
        %v1420 = vsub.s32 0, %v1419
        %v1421 = vrot.slane %v1416, %v1420
        %vm1423 = vcmask 261120
        %v1425 = vsel %vm1423, %v1222, 0
        %v1428 = vsel %vm1423, %v1227, 0
        %v1431 = vsel %vm1423, %v1232, 0
        %v1434 = vsel %vm1423, %v1237, 0
        %v1437 = vsel %vm1423, %v1242, 0
        %v1440 = vsel %vm1423, %v1247, 0
        %v1443 = vsel %vm1423, %v1252, 0
        %v1446 = vsel %vm1423, %v1257, 0
        %v1449 = vsel %vm1423, %v1262, 0
        %v1452 = vsel %vm1423, %v1267, 0
        %v1455 = vsel %vm1423, %v1272, 0
        %v1458 = vsel %vm1423, %v1277, 0
        %v1461 = vsel %vm1423, %v1282, 0
        %v1464 = vsel %vm1423, %v1287, 0
        %v1467 = vsel %vm1423, %v1292, 0
        %v1470 = vsel %vm1423, %v1297, 0
        %v1473 = vsel %vm1423, %v1302, 0
        %v1476 = vsel %vm1423, %v1307, 0
        %v1479 = vsel %vm1423, %v1312, 0
        %v1482 = vsel %vm1423, %v1317, 0
        %v1485 = vsel %vm1423, %v1322, 0
        %v1488 = vsel %vm1423, %v1327, 0
        %v1491 = vsel %vm1423, %v1332, 0
        %v1494 = vsel %vm1423, %v1337, 0
        %v1497 = vsel %vm1423, %v1342, 0
        %v1500 = vsel %vm1423, %v1347, 0
        %v1503 = vsel %vm1423, %v1352, 0
        %v1506 = vsel %vm1423, %v1357, 0
        %v1509 = vsel %vm1423, %v1362, 0
        %v1512 = vsel %vm1423, %v1367, 0
        %v1515 = vsel %vm1423, %v1372, 0
        %v1518 = vsel %vm1423, %v1377, 0
        %1520 = vmatprep.subr.mxu0 0.0
        %1521 = vmatpush1.msra.mxu0 0.0
        %1522 = vmatprep.subr.mxu0 0.0
        %1523 = vmatpush1.msra.mxu0 0.0
        %1524 = vmatprep.subr.mxu0 0.0
        %1525 = vmatpush1.msra.mxu0 0.0
        %1526 = vmatprep.subr.mxu0 0.0
        %1527 = vmatpush1.msra.mxu0 0.0
        %1528 = vmatprep.subr.mxu0 0.0
        %1529 = vmatpush1.msra.mxu0 0.0
        %1530 = vmatprep.subr.mxu0 0.0
        %1531 = vmatpush1.msra.mxu0 0.0
        %1532 = vmatprep.subr.mxu0 0.0
        %1533 = vmatpush1.msra.mxu0 0.0
        %1534 = vmatprep.subr.mxu0 0.0
        %1535 = vmatpush1.msra.mxu0 0.0
        %1536 = vmatprep.subr.mxu0 0.0
        %1537 = vmatpush1.msra.mxu0 0.0
        %1538 = vmatprep.subr.mxu0 0.0
        %1539 = vmatpush1.msra.mxu0 0.0
        %1540 = vmatprep.subr.mxu0 0.0
        %1541 = vmatpush1.msra.mxu0 0.0
        %1542 = vmatprep.subr.mxu0 0.0
        %1543 = vmatpush1.msra.mxu0 0.0
        %1544 = vmatprep.subr.mxu0 0.0
        %1545 = vmatpush1.msra.mxu0 %v1415
        %1546 = vmatprep.subr.mxu0 0.0
        %1547 = vmatpush1.msra.mxu0 %v1414
        %1548 = vmatprep.subr.mxu0 0.0
        %1549 = vmatpush1.msra.mxu0 %v1413
        %1550 = vmatprep.subr.mxu0 0.0
        %1551 = vmatpush1.msra.mxu0 %v1412
        %1552 = vmatprep.subr.mxu0 0.0
        %1553 = vmatpush2.msra.mxu0 0.0
        %1554 = vmatprep.subr.mxu0 0.0
        %1555 = vmatpush2.msra.mxu0 0.0
        %1556 = vmatprep.subr.mxu0 0.0
        %1557 = vmatpush2.msra.mxu0 0.0
        %1558 = vmatprep.subr.mxu0 0.0
        %1559 = vmatpush2.msra.mxu0 0.0
        %1560 = vmatprep.subr.mxu0 0.0
        %1561 = vmatpush2.msra.mxu0 0.0
        %1562 = vmatprep.subr.mxu0 0.0
        %1563 = vmatpush2.msra.mxu0 0.0
        %1564 = vmatprep.subr.mxu0 0.0
        %1565 = vmatpush2.msra.mxu0 0.0
        %1566 = vmatprep.subr.mxu0 0.0
        %1567 = vmatpush2.msra.mxu0 0.0
        %1568 = vmatprep.subr.mxu0 0.0
        %1569 = vmatpush2.msra.mxu0 0.0
        %1570 = vmatprep.subr.mxu0 0.0
        %1571 = vmatpush2.msra.mxu0 0.0
        %1572 = vmatprep.subr.mxu0 0.0
        %1573 = vmatpush2.msra.mxu0 0.0
        %1574 = vmatprep.subr.mxu0 0.0
        %1575 = vmatpush2.msra.mxu0 0.0
        %1576 = vmatprep.subr.mxu0 0.0
        %1577 = vmatpush2.msra.mxu0 0.0
        %1578 = vmatprep.subr.mxu0 0.0
        %1579 = vmatpush2.msra.mxu0 0.0
        %1580 = vmatprep.subr.mxu0 0.0
        %1581 = vmatpush2.msra.mxu0 0.0
        %1582 = vmatprep.subr.mxu0 0.0
        %1583 = vmatpush2.msra.mxu0 0.0
        %1584 = vmatprep.mubr.f32.mxu0 0.0
        %1585 = vmatmul.mubr.f32.gmra.mxu0 %v1425
        %v1586 = vpop.f32.mrf.mxu0
        %v1587 = vadd.f32 %v1421, %v1586
        %v1588 = vpop.f32.mrf.mxu0
        %1589 = vmatprep.mubr.f32.mxu0 0.0
        %1590 = vmatmul.mubr.f32.gmra.mxu0 %v1428
        %v1591 = vpop.f32.mrf.mxu0
        %v1592 = vadd.f32 %v1421, %v1591
        %v1593 = vpop.f32.mrf.mxu0
        %1594 = vmatprep.mubr.f32.mxu0 0.0
        %1595 = vmatmul.mubr.f32.gmra.mxu0 %v1431
        %v1596 = vpop.f32.mrf.mxu0
        %v1597 = vadd.f32 %v1421, %v1596
        %v1598 = vpop.f32.mrf.mxu0
        %1599 = vmatprep.mubr.f32.mxu0 0.0
        %1600 = vmatmul.mubr.f32.gmra.mxu0 %v1434
        %v1601 = vpop.f32.mrf.mxu0
        %v1602 = vadd.f32 %v1421, %v1601
        %v1603 = vpop.f32.mrf.mxu0
        %1604 = vmatprep.mubr.f32.mxu0 0.0
        %1605 = vmatmul.mubr.f32.gmra.mxu0 %v1437
        %v1606 = vpop.f32.mrf.mxu0
        %v1607 = vadd.f32 %v1421, %v1606
        %v1608 = vpop.f32.mrf.mxu0
        %1609 = vmatprep.mubr.f32.mxu0 0.0
        %1610 = vmatmul.mubr.f32.gmra.mxu0 %v1440
        %v1611 = vpop.f32.mrf.mxu0
        %v1612 = vadd.f32 %v1421, %v1611
        %v1613 = vpop.f32.mrf.mxu0
        %1614 = vmatprep.mubr.f32.mxu0 0.0
        %1615 = vmatmul.mubr.f32.gmra.mxu0 %v1443
        %v1616 = vpop.f32.mrf.mxu0
        %v1617 = vadd.f32 %v1421, %v1616
        %v1618 = vpop.f32.mrf.mxu0
        %1619 = vmatprep.mubr.f32.mxu0 0.0
        %1620 = vmatmul.mubr.f32.gmra.mxu0 %v1446
        %v1621 = vpop.f32.mrf.mxu0
        %v1622 = vadd.f32 %v1421, %v1621
        %v1623 = vpop.f32.mrf.mxu0
        %1624 = vmatprep.mubr.f32.mxu0 0.0
        %1625 = vmatmul.mubr.f32.gmra.mxu0 %v1449
        %v1626 = vpop.f32.mrf.mxu0
        %v1627 = vadd.f32 %v1421, %v1626
        %v1628 = vpop.f32.mrf.mxu0
        %1629 = vmatprep.mubr.f32.mxu0 0.0
        %1630 = vmatmul.mubr.f32.gmra.mxu0 %v1452
        %v1631 = vpop.f32.mrf.mxu0
        %v1632 = vadd.f32 %v1421, %v1631
        %v1633 = vpop.f32.mrf.mxu0
        %1634 = vmatprep.mubr.f32.mxu0 0.0
        %1635 = vmatmul.mubr.f32.gmra.mxu0 %v1455
        %v1636 = vpop.f32.mrf.mxu0
        %v1637 = vadd.f32 %v1421, %v1636
        %v1638 = vpop.f32.mrf.mxu0
        %1639 = vmatprep.mubr.f32.mxu0 0.0
        %1640 = vmatmul.mubr.f32.gmra.mxu0 %v1458
        %v1641 = vpop.f32.mrf.mxu0
        %v1642 = vadd.f32 %v1421, %v1641
        %v1643 = vpop.f32.mrf.mxu0
        %1644 = vmatprep.mubr.f32.mxu0 0.0
        %1645 = vmatmul.mubr.f32.gmra.mxu0 %v1461
        %v1646 = vpop.f32.mrf.mxu0
        %v1647 = vadd.f32 %v1421, %v1646
        %v1648 = vpop.f32.mrf.mxu0
        %1649 = vmatprep.mubr.f32.mxu0 0.0
        %1650 = vmatmul.mubr.f32.gmra.mxu0 %v1464
        %v1651 = vpop.f32.mrf.mxu0
        %v1652 = vadd.f32 %v1421, %v1651
        %v1653 = vpop.f32.mrf.mxu0
        %1654 = vmatprep.mubr.f32.mxu0 0.0
        %1655 = vmatmul.mubr.f32.gmra.mxu0 %v1467
        %v1656 = vpop.f32.mrf.mxu0
        %v1657 = vadd.f32 %v1421, %v1656
        %v1658 = vpop.f32.mrf.mxu0
        %1659 = vmatprep.mubr.f32.mxu0 0.0
        %1660 = vmatmul.mubr.f32.gmra.mxu0 %v1470
        %v1661 = vpop.f32.mrf.mxu0
        %v1662 = vadd.f32 %v1421, %v1661
        %v1663 = vpop.f32.mrf.mxu0
        %1664 = vmatprep.mubr.f32.mxu0 0.0
        %1665 = vmatmul.mubr.f32.gmra.mxu0 %v1473
        %v1666 = vpop.f32.mrf.mxu0
        %v1667 = vadd.f32 %v1421, %v1666
        %v1668 = vpop.f32.mrf.mxu0
        %1669 = vmatprep.mubr.f32.mxu0 0.0
        %1670 = vmatmul.mubr.f32.gmra.mxu0 %v1476
        %v1671 = vpop.f32.mrf.mxu0
        %v1672 = vadd.f32 %v1421, %v1671
        %v1673 = vpop.f32.mrf.mxu0
        %1674 = vmatprep.mubr.f32.mxu0 0.0
        %1675 = vmatmul.mubr.f32.gmra.mxu0 %v1479
        %v1676 = vpop.f32.mrf.mxu0
        %v1677 = vadd.f32 %v1421, %v1676
        %v1678 = vpop.f32.mrf.mxu0
        %1679 = vmatprep.mubr.f32.mxu0 0.0
        %1680 = vmatmul.mubr.f32.gmra.mxu0 %v1482
        %v1681 = vpop.f32.mrf.mxu0
        %v1682 = vadd.f32 %v1421, %v1681
        %v1683 = vpop.f32.mrf.mxu0
        %1684 = vmatprep.mubr.f32.mxu0 0.0
        %1685 = vmatmul.mubr.f32.gmra.mxu0 %v1485
        %v1686 = vpop.f32.mrf.mxu0
        %v1687 = vadd.f32 %v1421, %v1686
        %v1688 = vpop.f32.mrf.mxu0
        %1689 = vmatprep.mubr.f32.mxu0 0.0
        %1690 = vmatmul.mubr.f32.gmra.mxu0 %v1488
        %v1691 = vpop.f32.mrf.mxu0
        %v1692 = vadd.f32 %v1421, %v1691
        %v1693 = vpop.f32.mrf.mxu0
        %1694 = vmatprep.mubr.f32.mxu0 0.0
        %1695 = vmatmul.mubr.f32.gmra.mxu0 %v1491
        %v1696 = vpop.f32.mrf.mxu0
        %v1697 = vadd.f32 %v1421, %v1696
        %v1698 = vpop.f32.mrf.mxu0
        %1699 = vmatprep.mubr.f32.mxu0 0.0
        %1700 = vmatmul.mubr.f32.gmra.mxu0 %v1494
        %v1701 = vpop.f32.mrf.mxu0
        %v1702 = vadd.f32 %v1421, %v1701
        %v1703 = vpop.f32.mrf.mxu0
        %1704 = vmatprep.mubr.f32.mxu0 0.0
        %1705 = vmatmul.mubr.f32.gmra.mxu0 %v1497
        %v1706 = vpop.f32.mrf.mxu0
        %v1707 = vadd.f32 %v1421, %v1706
        %v1708 = vpop.f32.mrf.mxu0
        %1709 = vmatprep.mubr.f32.mxu0 0.0
        %1710 = vmatmul.mubr.f32.gmra.mxu0 %v1500
        %v1711 = vpop.f32.mrf.mxu0
        %v1712 = vadd.f32 %v1421, %v1711
        %v1713 = vpop.f32.mrf.mxu0
        %1714 = vmatprep.mubr.f32.mxu0 0.0
        %1715 = vmatmul.mubr.f32.gmra.mxu0 %v1503
        %v1716 = vpop.f32.mrf.mxu0
        %v1717 = vadd.f32 %v1421, %v1716
        %v1718 = vpop.f32.mrf.mxu0
        %1719 = vmatprep.mubr.f32.mxu0 0.0
        %1720 = vmatmul.mubr.f32.gmra.mxu0 %v1506
        %v1721 = vpop.f32.mrf.mxu0
        %v1722 = vadd.f32 %v1421, %v1721
        %v1723 = vpop.f32.mrf.mxu0
        %1724 = vmatprep.mubr.f32.mxu0 0.0
        %1725 = vmatmul.mubr.f32.gmra.mxu0 %v1509
        %v1726 = vpop.f32.mrf.mxu0
        %v1727 = vadd.f32 %v1421, %v1726
        %v1728 = vpop.f32.mrf.mxu0
        %1729 = vmatprep.mubr.f32.mxu0 0.0
        %1730 = vmatmul.mubr.f32.gmra.mxu0 %v1512
        %v1731 = vpop.f32.mrf.mxu0
        %v1732 = vadd.f32 %v1421, %v1731
        %v1733 = vpop.f32.mrf.mxu0
        %1734 = vmatprep.mubr.f32.mxu0 0.0
        %1735 = vmatmul.mubr.f32.gmra.mxu0 %v1515
        %v1736 = vpop.f32.mrf.mxu0
        %v1737 = vadd.f32 %v1421, %v1736
        %v1738 = vpop.f32.mrf.mxu0
        %1739 = vmatprep.mubr.f32.mxu0 0.0
        %1740 = vmatmul.mubr.f32.gmra.mxu0 %v1518
        %v1741 = vpop.f32.mrf.mxu0
        %v1742 = vadd.f32 %v1421, %v1741
        %v1743 = vpop.f32.mrf.mxu0
        %1744 = vdwg.mxu0
        %v1745 = vtanh.pop %v1587
        %v1746 = vtanh.pop %v1592
        %v1747 = vtanh.pop %v1597
        %v1748 = vtanh.pop %v1602
        %v1749 = vtanh.pop %v1607
        %v1750 = vtanh.pop %v1612
        %v1751 = vtanh.pop %v1617
        %v1752 = vtanh.pop %v1622
        %v1753 = vtanh.pop %v1627
        %v1754 = vtanh.pop %v1632
        %v1755 = vtanh.pop %v1637
        %v1756 = vtanh.pop %v1642
        %v1757 = vtanh.pop %v1647
        %v1758 = vtanh.pop %v1652
        %v1759 = vtanh.pop %v1657
        %v1760 = vtanh.pop %v1662
        %v1761 = vtanh.pop %v1667
        %v1762 = vtanh.pop %v1672
        %v1763 = vtanh.pop %v1677
        %v1764 = vtanh.pop %v1682
        %v1765 = vtanh.pop %v1687
        %v1766 = vtanh.pop %v1692
        %v1767 = vtanh.pop %v1697
        %v1768 = vtanh.pop %v1702
        %v1769 = vtanh.pop %v1707
        %v1770 = vtanh.pop %v1712
        %v1771 = vtanh.pop %v1717
        %v1772 = vtanh.pop %v1722
        %v1773 = vtanh.pop %v1727
        %v1774 = vtanh.pop %v1732
        %v1775 = vtanh.pop %v1737
        %v1776 = vtanh.pop %v1742
        %v1777 = vld [vmem:[%s7] sm:$0xff]
        %v1778 = vld [vmem:[%s7 + $0x8] sm:$0xff]
        %v1779 = vld [vmem:[%s7 + $0x10] sm:$0xff]
        %v1780 = vld [vmem:[%s7 + $0x18] sm:$0xff]
        %v1781 = vld [vmem:[%s7 + $0x20] sm:$0xff]
        %v1782 = vld [vmem:[%s7 + $0x28] sm:$0xff]
        %v1783 = vld [vmem:[%s7 + $0x30] sm:$0xff]
        %v1784 = vld [vmem:[%s7 + $0x38] sm:$0xff]
        %v1785 = vld [vmem:[%s7 + $0x40] sm:$0xff]
        %v1786 = vld [vmem:[%s7 + $0x48] sm:$0xff]
        %v1787 = vld [vmem:[%s7 + $0x50] sm:$0xff]
        %v1788 = vld [vmem:[%s7 + $0x58] sm:$0xff]
        %v1789 = vld [vmem:[%s7 + $0x60] sm:$0xff]
        %v1790 = vld [vmem:[%s7 + $0x68] sm:$0xff]
        %v1791 = vld [vmem:[%s7 + $0x70] sm:$0xff]
        %v1792 = vld [vmem:[%s7 + $0x78] sm:$0xff]
        %v1793 = vld [vmem:[%s8] sm:$0x3]
        %v1795 = vlaneseq
        %v1796 = vshrl.u32 %v1795, 7
        %v1797 = vsub.s32 0, %v1796
        %v1798 = vrot.slane %v1793, %v1797
        %v1799 = vlaneseq
        %v1800 = vshrl.u32 %v1799, 7
        %v1801 = vsub.s32 1, %v1800
        %v1802 = vrot.slane %v1793, %v1801
        %v1806 = vsel %vm1058, %v1745, 0
        %v1809 = vsel %vm1058, %v1746, 0
        %v1812 = vsel %vm1058, %v1747, 0
        %v1815 = vsel %vm1058, %v1748, 0
        %v1818 = vsel %vm1058, %v1749, 0
        %v1821 = vsel %vm1058, %v1750, 0
        %v1824 = vsel %vm1058, %v1751, 0
        %v1827 = vsel %vm1058, %v1752, 0
        %v1830 = vsel %vm1058, %v1753, 0
        %v1833 = vsel %vm1058, %v1754, 0
        %v1836 = vsel %vm1058, %v1755, 0
        %v1839 = vsel %vm1058, %v1756, 0
        %v1842 = vsel %vm1058, %v1757, 0
        %v1845 = vsel %vm1058, %v1758, 0
        %v1848 = vsel %vm1058, %v1759, 0
        %v1851 = vsel %vm1058, %v1760, 0
        %v1854 = vsel %vm1058, %v1761, 0
        %v1857 = vsel %vm1058, %v1762, 0
        %v1860 = vsel %vm1058, %v1763, 0
        %v1863 = vsel %vm1058, %v1764, 0
        %v1866 = vsel %vm1058, %v1765, 0
        %v1869 = vsel %vm1058, %v1766, 0
        %v1872 = vsel %vm1058, %v1767, 0
        %v1875 = vsel %vm1058, %v1768, 0
        %v1878 = vsel %vm1058, %v1769, 0
        %v1881 = vsel %vm1058, %v1770, 0
        %v1884 = vsel %vm1058, %v1771, 0
        %v1887 = vsel %vm1058, %v1772, 0
        %v1890 = vsel %vm1058, %v1773, 0
        %v1893 = vsel %vm1058, %v1774, 0
        %v1896 = vsel %vm1058, %v1775, 0
        %v1899 = vsel %vm1058, %v1776, 0
        %1901 = vmatprep.subr.mxu0 0.0
        %1902 = vmatpush1.msra.mxu0 0.0
        %1903 = vmatprep.subr.mxu0 0.0
        %1904 = vmatpush1.msra.mxu0 0.0
        %1905 = vmatprep.subr.mxu0 0.0
        %1906 = vmatpush1.msra.mxu0 0.0
        %1907 = vmatprep.subr.mxu0 0.0
        %1908 = vmatpush1.msra.mxu0 0.0
        %1909 = vmatprep.subr.mxu0 0.0
        %1910 = vmatpush1.msra.mxu0 0.0
        %1911 = vmatprep.subr.mxu0 0.0
        %1912 = vmatpush1.msra.mxu0 0.0
        %1913 = vmatprep.subr.mxu0 0.0
        %1914 = vmatpush1.msra.mxu0 0.0
        %1915 = vmatprep.subr.mxu0 0.0
        %1916 = vmatpush1.msra.mxu0 0.0
        %1917 = vmatprep.subr.mxu0 %v1792
        %1918 = vmatpush1.msra.mxu0 %v1791
        %1919 = vmatprep.subr.mxu0 %v1790
        %1920 = vmatpush1.msra.mxu0 %v1789
        %1921 = vmatprep.subr.mxu0 %v1788
        %1922 = vmatpush1.msra.mxu0 %v1787
        %1923 = vmatprep.subr.mxu0 %v1786
        %1924 = vmatpush1.msra.mxu0 %v1785
        %1925 = vmatprep.subr.mxu0 %v1784
        %1926 = vmatpush1.msra.mxu0 %v1783
        %1927 = vmatprep.subr.mxu0 %v1782
        %1928 = vmatpush1.msra.mxu0 %v1781
        %1929 = vmatprep.subr.mxu0 %v1780
        %1930 = vmatpush1.msra.mxu0 %v1779
        %1931 = vmatprep.subr.mxu0 %v1778
        %1932 = vmatpush1.msra.mxu0 %v1777
        %1933 = vmatprep.subr.mxu0 0.0
        %1934 = vmatpush2.msra.mxu0 0.0
        %1935 = vmatprep.subr.mxu0 0.0
        %1936 = vmatpush2.msra.mxu0 0.0
        %1937 = vmatprep.subr.mxu0 0.0
        %1938 = vmatpush2.msra.mxu0 0.0
        %1939 = vmatprep.subr.mxu0 0.0
        %1940 = vmatpush2.msra.mxu0 0.0
        %1941 = vmatprep.subr.mxu0 0.0
        %1942 = vmatpush2.msra.mxu0 0.0
        %1943 = vmatprep.subr.mxu0 0.0
        %1944 = vmatpush2.msra.mxu0 0.0
        %1945 = vmatprep.subr.mxu0 0.0
        %1946 = vmatpush2.msra.mxu0 0.0
        %1947 = vmatprep.subr.mxu0 0.0
        %1948 = vmatpush2.msra.mxu0 0.0
        %1949 = vmatprep.subr.mxu0 0.0
        %1950 = vmatpush2.msra.mxu0 0.0
        %1951 = vmatprep.subr.mxu0 0.0
        %1952 = vmatpush2.msra.mxu0 0.0
        %1953 = vmatprep.subr.mxu0 0.0
        %1954 = vmatpush2.msra.mxu0 0.0
        %1955 = vmatprep.subr.mxu0 0.0
        %1956 = vmatpush2.msra.mxu0 0.0
        %1957 = vmatprep.subr.mxu0 0.0
        %1958 = vmatpush2.msra.mxu0 0.0
        %1959 = vmatprep.subr.mxu0 0.0
        %1960 = vmatpush2.msra.mxu0 0.0
        %1961 = vmatprep.subr.mxu0 0.0
        %1962 = vmatpush2.msra.mxu0 0.0
        %1963 = vmatprep.subr.mxu0 0.0
        %1964 = vmatpush2.msra.mxu0 0.0
        %1965 = vmatprep.mubr.f32.mxu0 0.0
        %1966 = vmatmul.mubr.f32.gmra.mxu0 %v1806
        %v1967 = vpop.f32.mrf.mxu0
        %v1968 = vadd.f32 %v1798, %v1967
        %v1969 = vpop.f32.mrf.mxu0
        %v1970 = vadd.f32 %v1802, %v1969
        %1971 = vmatprep.mubr.f32.mxu0 0.0
        %1972 = vmatmul.mubr.f32.gmra.mxu0 %v1809
        %v1973 = vpop.f32.mrf.mxu0
        %v1974 = vadd.f32 %v1798, %v1973
        %v1975 = vpop.f32.mrf.mxu0
        %v1976 = vadd.f32 %v1802, %v1975
        %1977 = vmatprep.mubr.f32.mxu0 0.0
        %1978 = vmatmul.mubr.f32.gmra.mxu0 %v1812
        %v1979 = vpop.f32.mrf.mxu0
        %v1980 = vadd.f32 %v1798, %v1979
        %v1981 = vpop.f32.mrf.mxu0
        %v1982 = vadd.f32 %v1802, %v1981
        %1983 = vmatprep.mubr.f32.mxu0 0.0
        %1984 = vmatmul.mubr.f32.gmra.mxu0 %v1815
        %v1985 = vpop.f32.mrf.mxu0
        %v1986 = vadd.f32 %v1798, %v1985
        %v1987 = vpop.f32.mrf.mxu0
        %v1988 = vadd.f32 %v1802, %v1987
        %1989 = vmatprep.mubr.f32.mxu0 0.0
        %1990 = vmatmul.mubr.f32.gmra.mxu0 %v1818
        %v1991 = vpop.f32.mrf.mxu0
        %v1992 = vadd.f32 %v1798, %v1991
        %v1993 = vpop.f32.mrf.mxu0
        %v1994 = vadd.f32 %v1802, %v1993
        %1995 = vmatprep.mubr.f32.mxu0 0.0
        %1996 = vmatmul.mubr.f32.gmra.mxu0 %v1821
        %v1997 = vpop.f32.mrf.mxu0
        %v1998 = vadd.f32 %v1798, %v1997
        %v1999 = vpop.f32.mrf.mxu0
        %v2000 = vadd.f32 %v1802, %v1999
        %2001 = vmatprep.mubr.f32.mxu0 0.0
        %2002 = vmatmul.mubr.f32.gmra.mxu0 %v1824
        %v2003 = vpop.f32.mrf.mxu0
        %v2004 = vadd.f32 %v1798, %v2003
        %v2005 = vpop.f32.mrf.mxu0
        %v2006 = vadd.f32 %v1802, %v2005
        %2007 = vmatprep.mubr.f32.mxu0 0.0
        %2008 = vmatmul.mubr.f32.gmra.mxu0 %v1827
        %v2009 = vpop.f32.mrf.mxu0
        %v2010 = vadd.f32 %v1798, %v2009
        %v2011 = vpop.f32.mrf.mxu0
        %v2012 = vadd.f32 %v1802, %v2011
        %2013 = vmatprep.mubr.f32.mxu0 0.0
        %2014 = vmatmul.mubr.f32.gmra.mxu0 %v1830
        %v2015 = vpop.f32.mrf.mxu0
        %v2016 = vadd.f32 %v1798, %v2015
        %v2017 = vpop.f32.mrf.mxu0
        %v2018 = vadd.f32 %v1802, %v2017
        %2019 = vmatprep.mubr.f32.mxu0 0.0
        %2020 = vmatmul.mubr.f32.gmra.mxu0 %v1833
        %v2021 = vpop.f32.mrf.mxu0
        %v2022 = vadd.f32 %v1798, %v2021
        %v2023 = vpop.f32.mrf.mxu0
        %v2024 = vadd.f32 %v1802, %v2023
        %2025 = vmatprep.mubr.f32.mxu0 0.0
        %2026 = vmatmul.mubr.f32.gmra.mxu0 %v1836
        %v2027 = vpop.f32.mrf.mxu0
        %v2028 = vadd.f32 %v1798, %v2027
        %v2029 = vpop.f32.mrf.mxu0
        %v2030 = vadd.f32 %v1802, %v2029
        %2031 = vmatprep.mubr.f32.mxu0 0.0
        %2032 = vmatmul.mubr.f32.gmra.mxu0 %v1839
        %v2033 = vpop.f32.mrf.mxu0
        %v2034 = vadd.f32 %v1798, %v2033
        %v2035 = vpop.f32.mrf.mxu0
        %v2036 = vadd.f32 %v1802, %v2035
        %2037 = vmatprep.mubr.f32.mxu0 0.0
        %2038 = vmatmul.mubr.f32.gmra.mxu0 %v1842
        %v2039 = vpop.f32.mrf.mxu0
        %v2040 = vadd.f32 %v1798, %v2039
        %v2041 = vpop.f32.mrf.mxu0
        %v2042 = vadd.f32 %v1802, %v2041
        %2043 = vmatprep.mubr.f32.mxu0 0.0
        %2044 = vmatmul.mubr.f32.gmra.mxu0 %v1845
        %v2045 = vpop.f32.mrf.mxu0
        %v2046 = vadd.f32 %v1798, %v2045
        %v2047 = vpop.f32.mrf.mxu0
        %v2048 = vadd.f32 %v1802, %v2047
        %2049 = vmatprep.mubr.f32.mxu0 0.0
        %2050 = vmatmul.mubr.f32.gmra.mxu0 %v1848
        %v2051 = vpop.f32.mrf.mxu0
        %v2052 = vadd.f32 %v1798, %v2051
        %v2053 = vpop.f32.mrf.mxu0
        %v2054 = vadd.f32 %v1802, %v2053
        %2055 = vmatprep.mubr.f32.mxu0 0.0
        %2056 = vmatmul.mubr.f32.gmra.mxu0 %v1851
        %v2057 = vpop.f32.mrf.mxu0
        %v2058 = vadd.f32 %v1798, %v2057
        %v2059 = vpop.f32.mrf.mxu0
        %v2060 = vadd.f32 %v1802, %v2059
        %2061 = vmatprep.mubr.f32.mxu0 0.0
        %2062 = vmatmul.mubr.f32.gmra.mxu0 %v1854
        %v2063 = vpop.f32.mrf.mxu0
        %v2064 = vadd.f32 %v1798, %v2063
        %v2065 = vpop.f32.mrf.mxu0
        %v2066 = vadd.f32 %v1802, %v2065
        %2067 = vmatprep.mubr.f32.mxu0 0.0
        %2068 = vmatmul.mubr.f32.gmra.mxu0 %v1857
        %v2069 = vpop.f32.mrf.mxu0
        %v2070 = vadd.f32 %v1798, %v2069
        %v2071 = vpop.f32.mrf.mxu0
        %v2072 = vadd.f32 %v1802, %v2071
        %2073 = vmatprep.mubr.f32.mxu0 0.0
        %2074 = vmatmul.mubr.f32.gmra.mxu0 %v1860
        %v2075 = vpop.f32.mrf.mxu0
        %v2076 = vadd.f32 %v1798, %v2075
        %v2077 = vpop.f32.mrf.mxu0
        %v2078 = vadd.f32 %v1802, %v2077
        %2079 = vmatprep.mubr.f32.mxu0 0.0
        %2080 = vmatmul.mubr.f32.gmra.mxu0 %v1863
        %v2081 = vpop.f32.mrf.mxu0
        %v2082 = vadd.f32 %v1798, %v2081
        %v2083 = vpop.f32.mrf.mxu0
        %v2084 = vadd.f32 %v1802, %v2083
        %2085 = vmatprep.mubr.f32.mxu0 0.0
        %2086 = vmatmul.mubr.f32.gmra.mxu0 %v1866
        %v2087 = vpop.f32.mrf.mxu0
        %v2088 = vadd.f32 %v1798, %v2087
        %v2089 = vpop.f32.mrf.mxu0
        %v2090 = vadd.f32 %v1802, %v2089
        %2091 = vmatprep.mubr.f32.mxu0 0.0
        %2092 = vmatmul.mubr.f32.gmra.mxu0 %v1869
        %v2093 = vpop.f32.mrf.mxu0
        %v2094 = vadd.f32 %v1798, %v2093
        %v2095 = vpop.f32.mrf.mxu0
        %v2096 = vadd.f32 %v1802, %v2095
        %2097 = vmatprep.mubr.f32.mxu0 0.0
        %2098 = vmatmul.mubr.f32.gmra.mxu0 %v1872
        %v2099 = vpop.f32.mrf.mxu0
        %v2100 = vadd.f32 %v1798, %v2099
        %v2101 = vpop.f32.mrf.mxu0
        %v2102 = vadd.f32 %v1802, %v2101
        %2103 = vmatprep.mubr.f32.mxu0 0.0
        %2104 = vmatmul.mubr.f32.gmra.mxu0 %v1875
        %v2105 = vpop.f32.mrf.mxu0
        %v2106 = vadd.f32 %v1798, %v2105
        %v2107 = vpop.f32.mrf.mxu0
        %v2108 = vadd.f32 %v1802, %v2107
        %2109 = vmatprep.mubr.f32.mxu0 0.0
        %2110 = vmatmul.mubr.f32.gmra.mxu0 %v1878
        %v2111 = vpop.f32.mrf.mxu0
        %v2112 = vadd.f32 %v1798, %v2111
        %v2113 = vpop.f32.mrf.mxu0
        %v2114 = vadd.f32 %v1802, %v2113
        %2115 = vmatprep.mubr.f32.mxu0 0.0
        %2116 = vmatmul.mubr.f32.gmra.mxu0 %v1881
        %v2117 = vpop.f32.mrf.mxu0
        %v2118 = vadd.f32 %v1798, %v2117
        %v2119 = vpop.f32.mrf.mxu0
        %v2120 = vadd.f32 %v1802, %v2119
        %2121 = vmatprep.mubr.f32.mxu0 0.0
        %2122 = vmatmul.mubr.f32.gmra.mxu0 %v1884
        %v2123 = vpop.f32.mrf.mxu0
        %v2124 = vadd.f32 %v1798, %v2123
        %v2125 = vpop.f32.mrf.mxu0
        %v2126 = vadd.f32 %v1802, %v2125
        %2127 = vmatprep.mubr.f32.mxu0 0.0
        %2128 = vmatmul.mubr.f32.gmra.mxu0 %v1887
        %v2129 = vpop.f32.mrf.mxu0
        %v2130 = vadd.f32 %v1798, %v2129
        %v2131 = vpop.f32.mrf.mxu0
        %v2132 = vadd.f32 %v1802, %v2131
        %2133 = vmatprep.mubr.f32.mxu0 0.0
        %2134 = vmatmul.mubr.f32.gmra.mxu0 %v1890
        %v2135 = vpop.f32.mrf.mxu0
        %v2136 = vadd.f32 %v1798, %v2135
        %v2137 = vpop.f32.mrf.mxu0
        %v2138 = vadd.f32 %v1802, %v2137
        %2139 = vmatprep.mubr.f32.mxu0 0.0
        %2140 = vmatmul.mubr.f32.gmra.mxu0 %v1893
        %v2141 = vpop.f32.mrf.mxu0
        %v2142 = vadd.f32 %v1798, %v2141
        %v2143 = vpop.f32.mrf.mxu0
        %v2144 = vadd.f32 %v1802, %v2143
        %2145 = vmatprep.mubr.f32.mxu0 0.0
        %2146 = vmatmul.mubr.f32.gmra.mxu0 %v1896
        %v2147 = vpop.f32.mrf.mxu0
        %v2148 = vadd.f32 %v1798, %v2147
        %v2149 = vpop.f32.mrf.mxu0
        %v2150 = vadd.f32 %v1802, %v2149
        %2151 = vmatprep.mubr.f32.mxu0 0.0
        %2152 = vmatmul.mubr.f32.gmra.mxu0 %v1899
        %v2153 = vpop.f32.mrf.mxu0
        %v2154 = vadd.f32 %v1798, %v2153
        %v2155 = vpop.f32.mrf.mxu0
        %v2156 = vadd.f32 %v1802, %v2155
        %2157 = vdwg.mxu0
        %2158 = vst [vmem:[%s379] sm:$0xff] %v1968
        %2159 = vst [vmem:[%s379 + $0x8] sm:$0xff] %v1970
        %2160 = vst [vmem:[%s379 + $0x10] sm:$0xff] %v1974
        %2161 = vst [vmem:[%s379 + $0x18] sm:$0xff] %v1976
        %2162 = vst [vmem:[%s379 + $0x20] sm:$0xff] %v1980
        %2163 = vst [vmem:[%s379 + $0x28] sm:$0xff] %v1982
        %2164 = vst [vmem:[%s379 + $0x30] sm:$0xff] %v1986
        %2165 = vst [vmem:[%s379 + $0x38] sm:$0xff] %v1988
        %2166 = vst [vmem:[%s379 + $0x40] sm:$0xff] %v1992
        %2167 = vst [vmem:[%s379 + $0x48] sm:$0xff] %v1994
        %2168 = vst [vmem:[%s379 + $0x50] sm:$0xff] %v1998
        %2169 = vst [vmem:[%s379 + $0x58] sm:$0xff] %v2000
        %2170 = vst [vmem:[%s379 + $0x60] sm:$0xff] %v2004
        %2171 = vst [vmem:[%s379 + $0x68] sm:$0xff] %v2006
        %2172 = vst [vmem:[%s379 + $0x70] sm:$0xff] %v2010
        %2173 = vst [vmem:[%s379 + $0x78] sm:$0xff] %v2012
        %2174 = vst [vmem:[%s379 + $0x80] sm:$0xff] %v2016
        %2175 = vst [vmem:[%s379 + $0x88] sm:$0xff] %v2018
        %2176 = vst [vmem:[%s379 + $0x90] sm:$0xff] %v2022
        %2177 = vst [vmem:[%s379 + $0x98] sm:$0xff] %v2024
        %2178 = vst [vmem:[%s379 + $0xa0] sm:$0xff] %v2028
        %2179 = vst [vmem:[%s379 + $0xa8] sm:$0xff] %v2030
        %2180 = vst [vmem:[%s379 + $0xb0] sm:$0xff] %v2034
        %2181 = vst [vmem:[%s379 + $0xb8] sm:$0xff] %v2036
        %2182 = vst [vmem:[%s379 + $0xc0] sm:$0xff] %v2040
        %2183 = vst [vmem:[%s379 + $0xc8] sm:$0xff] %v2042
        %2184 = vst [vmem:[%s379 + $0xd0] sm:$0xff] %v2046
        %2185 = vst [vmem:[%s379 + $0xd8] sm:$0xff] %v2048
        %2186 = vst [vmem:[%s379 + $0xe0] sm:$0xff] %v2052
        %2187 = vst [vmem:[%s379 + $0xe8] sm:$0xff] %v2054
        %2188 = vst [vmem:[%s379 + $0xf0] sm:$0xff] %v2058
        %2189 = vst [vmem:[%s379 + $0xf8] sm:$0xff] %v2060
        %2190 = vst [vmem:[%s379 + $0x100] sm:$0xff] %v2064
        %2191 = vst [vmem:[%s379 + $0x108] sm:$0xff] %v2066
        %2192 = vst [vmem:[%s379 + $0x110] sm:$0xff] %v2070
        %2193 = vst [vmem:[%s379 + $0x118] sm:$0xff] %v2072
        %2194 = vst [vmem:[%s379 + $0x120] sm:$0xff] %v2076
        %2195 = vst [vmem:[%s379 + $0x128] sm:$0xff] %v2078
        %2196 = vst [vmem:[%s379 + $0x130] sm:$0xff] %v2082
        %2197 = vst [vmem:[%s379 + $0x138] sm:$0xff] %v2084
        %2198 = vst [vmem:[%s379 + $0x140] sm:$0xff] %v2088
        %2199 = vst [vmem:[%s379 + $0x148] sm:$0xff] %v2090
        %2200 = vst [vmem:[%s379 + $0x150] sm:$0xff] %v2094
        %2201 = vst [vmem:[%s379 + $0x158] sm:$0xff] %v2096
        %2202 = vst [vmem:[%s379 + $0x160] sm:$0xff] %v2100
        %2203 = vst [vmem:[%s379 + $0x168] sm:$0xff] %v2102
        %2204 = vst [vmem:[%s379 + $0x170] sm:$0xff] %v2106
        %2205 = vst [vmem:[%s379 + $0x178] sm:$0xff] %v2108
        %2206 = vst [vmem:[%s379 + $0x180] sm:$0xff] %v2112
        %2207 = vst [vmem:[%s379 + $0x188] sm:$0xff] %v2114
        %2208 = vst [vmem:[%s379 + $0x190] sm:$0xff] %v2118
        %2209 = vst [vmem:[%s379 + $0x198] sm:$0xff] %v2120
        %2210 = vst [vmem:[%s379 + $0x1a0] sm:$0xff] %v2124
        %2211 = vst [vmem:[%s379 + $0x1a8] sm:$0xff] %v2126
        %2212 = vst [vmem:[%s379 + $0x1b0] sm:$0xff] %v2130
        %2213 = vst [vmem:[%s379 + $0x1b8] sm:$0xff] %v2132
        %2214 = vst [vmem:[%s379 + $0x1c0] sm:$0xff] %v2136
        %2215 = vst [vmem:[%s379 + $0x1c8] sm:$0xff] %v2138
        %2216 = vst [vmem:[%s379 + $0x1d0] sm:$0xff] %v2142
        %2217 = vst [vmem:[%s379 + $0x1d8] sm:$0xff] %v2144
        %2218 = vst [vmem:[%s379 + $0x1e0] sm:$0xff] %v2148
        %2219 = vst [vmem:[%s379 + $0x1e8] sm:$0xff] %v2150
        %2220 = vst [vmem:[%s379 + $0x1f0] sm:$0xff] %v2154
        %2221 = vst [vmem:[%s379 + $0x1f8] sm:$0xff] %v2156
        %s2222 = sand.u32 %s230, 1
        %s2223 = scalar_lea.sflag [#allocation4], %s2222
        %s2224 = sand.u32 %s230, 1
        %s2225 = smul.addr %s2224, 512
        %s2226 = scalar_lea.vmem [#allocation5], %s2225
        %s2227 = smul.u32 32, %s28
        %p2228 = scmp.lt.s32.totalorder %s2227, 63
        %s2229 = scalar_select %p2228, %s2227, 63
        %s2230 = smul.addr %s2229, 8
        %s2231 = scalar_lea.vmem %s10, %s2230
        // Predicated region
        $region61: #{tpu_custom_call.1} parent=55 // pred_check
          %p2232 = pneg %p240
        $region62: #{tpu_custom_call.1} parent=55 // pred_check_branch
          %2234 = sbr.rel (%p2232) target = $region64
        $region63: #{tpu_custom_call.1} parent=55 // pred_region
          %s2235 = smul.u32 32, %s28
          %s2237 = ssub.s32 8192, 8192
          %2238 = vsyncadd %s2223, %s2237
          %s2239 = smul.addr %s2235, 2
          %s2240 = smul.addr %s2239, 128
          %s2241 = scalar_lea.hbm %s9, %s2240
          %s2242 = sshll.u32 %s2226, 4
          %s2243 = int_to_ptr.vmem [resolvable:$true] %s2242
          %2248 = dma.vmem_to_hbm [thread:$0]  %s2243, 8192, %s2241, %s2223, 256, 256, 16
        $region64: #{tpu_custom_call.1} parent=55 // pred_fallthru
          _
        // Predicated region
        $region65: #{tpu_custom_call.1} parent=55 // pred_check
          %p2249 = pneg %p266
        $region66: #{tpu_custom_call.1} parent=55 // pred_check_branch
          %2251 = sbr.rel (%p2249) target = $region68
        $region67: #{tpu_custom_call.1} parent=55 // pred_region
          %s2252 = smul.u32 32, %s28
        $region68: #{tpu_custom_call.1} parent=55 // pred_fallthru
          _
      $region56: #{tpu_custom_call.1} parent=5 // pred_fallthru
        _
      %p2253 = scmp.le.s32.totalorder 2, %s23
      // Predicated region
      $region69: #{tpu_custom_call.1} parent=5 // pred_check
        %p2254 = pneg %p2253
      $region70: #{tpu_custom_call.1} parent=5 // pred_check_branch
        %2256 = sbr.rel (%p2254) target = $region72
      $region71: #{tpu_custom_call.1} parent=5 // pred_region
        %s2257 = ssub.s32 %s23, 2
        // Predicated region
        $region73: #{tpu_custom_call.1} parent=71 // pred_check
          %p2258 = pneg %p246
        $region74: #{tpu_custom_call.1} parent=71 // pred_check_branch
          %2260 = sbr.rel (%p2258) target = $region76
        $region75: #{tpu_custom_call.1} parent=71 // pred_region
          %s2261 = sand.u32 %s231, 1
          %s2262 = scalar_lea.sflag [#allocation4], %s2261
          %s2263 = sand.u32 %s231, 1
          %s2264 = smul.addr %s2263, 512
          %s2265 = scalar_lea.vmem [#allocation5], %s2264
          %2266 = dma.done %s2262, 8192
        $region76: #{tpu_custom_call.1} parent=71 // pred_fallthru
          _
        // Predicated region
        $region77: #{tpu_custom_call.1} parent=71 // pred_check
          %p2267 = pneg %p272
        $region78: #{tpu_custom_call.1} parent=71 // pred_check_branch
          %2269 = sbr.rel (%p2267) target = $region80
        $region79: #{tpu_custom_call.1} parent=71 // pred_region
          %s2270 = smul.u32 32, %s29
          %p2271 = scmp.lt.s32.totalorder %s2270, 63
          %s2272 = scalar_select %p2271, %s2270, 63
          %s2273 = smul.addr %s2272, 8
          %s2274 = scalar_lea.vmem %s10, %s2273
        $region80: #{tpu_custom_call.1} parent=71 // pred_fallthru
          _
      $region72: #{tpu_custom_call.1} parent=5 // pred_fallthru
        _
    $region6: #{tpu_custom_call.1} parent=1 // loop_footer
      %s27 = sadd.s32 1, %s23
    $region7: #{tpu_custom_call.1} parent=1 // loop_footer_branch
      %22 = sbr.rel target = $region3
    $region8: #{tpu_custom_call.1} parent=1 // loop_exit
      _
    %2275 = vsyncpa [#allocation3], 1
    %s2276 = scalar_lea.sflag [#allocation3], 1
    %2277 = vsyncpa %s2276, 1
    %2278 = vsyncpa [#allocation4], 1
    %s2279 = scalar_lea.sflag [#allocation4], 1
    %2280 = vsyncpa %s2279, 1

</llo_original>
